<compile_context>
chip_gen: v7x
topology: tpu7x:2x2x1
jax: 0.10.0
libtpu: 0.0.40
codegen_flags: <defaults>
</compile_context>

<pallas_src>
import functools

import jax
import jax.numpy as jnp
from jax.experimental import pallas as pl
from jax.experimental.pallas import tpu as pltpu

_NEG_BIAS = -1e9   # bias for padded class columns -> exp() underflows to 0
_LANE = 128


def _round_up(x, m):
    return (x + m - 1) // m * m


def _cdiv(a, b):
    return -(-a // b)


def _tpu_kind():
    try:
        devs = jax.devices()
        return devs[0].device_kind.lower() if devs else ""
    except Exception:  # pragma: no cover
        return ""


def _exp_in_bf16():
    # v6e / v7x have a bf16-capable EUP (~2x transcendental throughput);
    # v5e does not (bf16 exp would only insert conversions) -> keep f32 there.
    kind = _tpu_kind()
    return ("v6" in kind) or ("v7" in kind)


def _vmem_cap_bytes():
    # v7x has 64 MiB physical VMEM -> leave headroom below it; v5e/v6e have
    # 128 MiB so a larger scoped limit is safe.
    return (56 if "v7" in _tpu_kind() else 100) * 2**20


def _vmem_limit_bytes(tT, Fp, Dp, Cp, single_buffer_weights):
    bf, f4 = 2, 4
    wbuf = 1 if single_buffer_weights else 2
    per_step = (
        2 * tT * Fp * bf                      # x tile, double-buffered bf16
        + wbuf * (Fp * Dp + Dp * Cp) * bf     # weights (bf16)
        + wbuf * (Dp + Cp) * f4               # biases (f32)
        + 2 * tT * Cp * bf                    # log_probs out, double-buffered
        + 2 * tT * _LANE * f4                 # per-row lse out, double-buffered
        + tT * Dp * f4 + 3 * tT * Cp * f4     # enc / logits / softmax temps
    )
    return int(min(_vmem_cap_bytes(), max(16 * 2**20, int(1.5 * per_step))))


def _ctc_finetune_kernel(x_ref, w_enc_ref, b_enc_ref, w_dec_ref, b_dec_ref,
                         logp_ref, lse_ref, *, exp_bf16):
    # x_ref: (tT, Fp) bf16; weights are grid-invariant VMEM residents.
    x = x_ref[...]

    # ---- "encoder" (features_only): per-timestep linear + ReLU ----
    enc = jnp.dot(x, w_enc_ref[...], preferred_element_type=jnp.float32)
    enc = jnp.maximum(enc + b_enc_ref[...], 0.0)                 # (tT, Dp) f32

    # ---- decoder: kernel_size=1 Conv1d over channels == matmul ----
    logits = jnp.dot(enc.astype(jnp.bfloat16), w_dec_ref[...],
                     preferred_element_type=jnp.float32) + b_dec_ref[...]

    # ---- log_softmax along the class dim (max-shifted) ----
    m = jnp.max(logits, axis=-1, keepdims=True)                  # (tT, 1) f32
    shifted = logits - m
    if exp_bf16:
        p = jnp.exp(shifted.astype(jnp.bfloat16)).astype(jnp.float32)
    else:
        p = jnp.exp(shifted)
    lse = jnp.log(jnp.sum(p, axis=-1, keepdims=True))            # (tT, 1) f32

    # Only bf16 log_probs + a tiny per-row logsumexp are written back; the
    # full-width logits stream is reconstructed outside (log_probs + m + lse).
    logp_ref[...] = (shifted - lse).astype(logp_ref.dtype)
    lse_ref[...] = jnp.broadcast_to(m + lse, lse_ref.shape)


@functools.partial(
    jax.jit,
    static_argnames=("time_tile", "num_classes", "exp_bf16",
                     "single_buffer_weights"))
def _ctc_core(x, w_enc_p, b_enc_p, w_dec_p, b_dec_p, *, time_tile, num_classes,
              exp_bf16, single_buffer_weights):
    """Fused encoder-proj + decoder + log_softmax on a statically shaped x."""
    B, T, F = x.shape
    Fp, Dp = w_enc_p.shape
    Cp = w_dec_p.shape[1]
    C = num_classes
    tT = time_tile
    Tp = _round_up(T, tT)

    xb = x.astype(jnp.bfloat16)
    if Tp != T or Fp != F:                      # skip the pad pass when aligned
        xb = jnp.pad(xb, ((0, 0), (0, Tp - T), (0, Fp - F)))

    nT = Tp // tT
    grid = (B, nT)

    def const2d(shape):
        # Grid-invariant block: single-buffer it in VMEM when supported.
        if single_buffer_weights:
            return pl.BlockSpec(shape, lambda b, t: (0, 0),
                                pipeline_mode=pl.Buffered(1))
        return pl.BlockSpec(shape, lambda b, t: (0, 0))

    grid_spec = pltpu.PrefetchScalarGridSpec(
        num_scalar_prefetch=0,
        grid=grid,
        in_specs=[
            pl.BlockSpec((pl.Squeezed(), tT, Fp), lambda b, t: (b, t, 0)),
            const2d((Fp, Dp)),
            const2d((1, Dp)),
            const2d((Dp, Cp)),
            const2d((1, Cp)),
        ],
        out_specs=[
            pl.BlockSpec((pl.Squeezed(), tT, Cp), lambda b, t: (b, t, 0)),
            pl.BlockSpec((pl.Squeezed(), tT, _LANE), lambda b, t: (b, t, 0)),
        ],
    )

    cost = pl.CostEstimate(
        flops=2 * B * Tp * (Fp * Dp + Dp * Cp),
        transcendentals=B * Tp * Cp,
        bytes_accessed=(xb.size * 2
                        + (w_enc_p.size + w_dec_p.size) * 2
                        + (b_enc_p.size + b_dec_p.size) * 4
                        + B * Tp * Cp * 2 + B * Tp * _LANE * 4),
    )

    logp_p, lse_p = pl.pallas_call(
        functools.partial(_ctc_finetune_kernel, exp_bf16=exp_bf16),
        out_shape=(
            jax.ShapeDtypeStruct((B, Tp, Cp), jnp.bfloat16),    # log_probs
            jax.ShapeDtypeStruct((B, Tp, _LANE), jnp.float32),  # per-row m+lse
        ),
        grid_spec=grid_spec,
        compiler_params=pltpu.CompilerParams(
            dimension_semantics=("parallel", "parallel"),
            vmem_limit_bytes=_vmem_limit_bytes(tT, Fp, Dp, Cp,
                                               single_buffer_weights)),
        cost_estimate=cost,
    )(xb, w_enc_p, b_enc_p, w_dec_p, b_dec_p)

    # Trim padding + reconstruct logits = log_probs + logsumexp(logits) inside
    # the same jit so XLA fuses them (no-ops when T % tT == 0 and C % 128 == 0).
    log_probs = logp_p[:, :T, :C]
    logits = log_probs.astype(jnp.float32) + lse_p[:, :T, :1]
    return log_probs, logits


def prepare_params(params):
    """Pads/casts weights once (hoisted out of the per-call jitted path)."""
    w_enc = jnp.asarray(params["w_enc"], jnp.float32)
    b_enc = jnp.asarray(params["b_enc"], jnp.float32).reshape(-1)
    w_dec = jnp.asarray(params["w_dec"], jnp.float32)
    b_dec = jnp.asarray(params["b_dec"], jnp.float32).reshape(-1)
    F, D = w_enc.shape
    C = w_dec.shape[-1]
    Fp, Dp, Cp = (_round_up(F, _LANE), _round_up(D, _LANE), _round_up(C, _LANE))
    return {
        "w_enc_p": jnp.pad(w_enc.astype(jnp.bfloat16),
                           ((0, Fp - F), (0, Dp - D))),
        "b_enc_p": jnp.pad(b_enc.reshape(1, D), ((0, 0), (0, Dp - D))),
        "w_dec_p": jnp.pad(w_dec.astype(jnp.bfloat16),
                           ((0, Dp - D), (0, Cp - C))),
        # Padded class columns get -1e9 bias so they vanish from log_softmax.
        "b_dec_p": jnp.pad(b_dec.reshape(1, C), ((0, 0), (0, Cp - C)),
                           constant_values=_NEG_BIAS),
        "num_classes": C,
        "num_features": F,
    }


def ctc_finetune_forward(input_signal, input_signal_length, params,
                         global_step=None, time_tile=None):
    """Returns (log_probs, encoded_len, logits) like CTCFinetuneModel.forward.

    log_probs are bf16 (softmax math is f32; consumers should upcast at the
    gather).  logits are reconstructed in f32 as log_probs + logsumexp(logits),
    so log_softmax(logits) matches log_probs by construction.
    """
    # TODO(synk): freeze_finetune_updates / torch.no_grad only gate gradients;
    #             they do not change the forward values, so global_step is unused.
    del global_step

    B, T, F = input_signal.shape
    del B, F
    prepared = params if "w_enc_p" in params else prepare_params(params)

    # Synthetic encoder does no temporal subsampling -> lengths pass through.
    encoded_len = input_signal_length

    # encoded.narrow(dim=2, start=0, length=max_output_len): the encoder here
    # is pointwise in time, so narrowing before it is equivalent.  Only done
    # when lengths are concrete (no host/device sync inside a trace).
    lengths_concrete = not isinstance(input_signal_length, jax.core.Tracer)
    if lengths_concrete:
        L = min(T, int(jnp.max(input_signal_length)))
        x = input_signal[:, :L, :]
    else:
        # TODO(synk): under tracing the outputs keep shape [B, T, C] instead of
        #             [B, max_output_len, C] (cannot sync on traced lengths).
        L = T
        x = input_signal

    # Time tile: near-equal chunks of <=256 rows (fills the 2x256x256 MXU on
    # v6e/v7x, bounds last-tile padding waste); always a multiple of 16 so the
    # bf16 (16,128) tiling constraint holds for any user-supplied time_tile.
    if time_tile is None:
        tT = _cdiv(L, _cdiv(L, 256)) if L > 0 else 16
    else:
        tT = int(time_tile)
    tT = max(16, min(_round_up(tT, 16), _round_up(max(L, 1), 16)))

    exp_bf16 = _exp_in_bf16()

    def run(single_buffer_weights):
        return _ctc_core(
            x, prepared["w_enc_p"], prepared["b_enc_p"],
            prepared["w_dec_p"], prepared["b_dec_p"],
            time_tile=tT, num_classes=prepared["num_classes"],
            exp_bf16=exp_bf16, single_buffer_weights=single_buffer_weights)

    try:
        log_probs, logits = run(True)    # single-buffer constant weight blocks
    except Exception:                    # pragma: no cover - fallback path
        log_probs, logits = run(False)   # default double-buffering

    return log_probs, encoded_len, logits


if __name__ == "__main__":
    key = jax.random.PRNGKey(0)
    # Small, module-consistent shapes: B=2 utterances, T=16 frames, F=32 input
    # features, D=32 encoder hidden, C=32 classes (num_classes + CTC blank).
    B, T, F, D, C = 2, 16, 32, 32, 32
    k1, k2, k3, k4, k5 = jax.random.split(key, 5)

    input_signal = jax.random.normal(k1, (B, T, F), dtype=jnp.float32)
    input_signal_length = jnp.array([8, 6], dtype=jnp.int32)  # max=8 < T

    params = {
        "w_enc": 0.1 * jax.random.normal(k2, (F, D), dtype=jnp.float32),
        "b_enc": 0.01 * jax.random.normal(k3, (1, D), dtype=jnp.float32),
        "w_dec": 0.1 * jax.random.normal(k4, (D, C), dtype=jnp.float32),
        "b_dec": 0.01 * jax.random.normal(k5, (1, C), dtype=jnp.float32),
    }
    prepared = prepare_params(params)   # one-time weight pad/cast (hoisted)

    log_probs, encoded_len, logits = ctc_finetune_forward(
        input_signal, input_signal_length, prepared, global_step=0)
    jax.block_until_ready((log_probs, encoded_len, logits))

    # Sanity 1: shapes match module semantics (narrowed to max length = 8).
    assert log_probs.shape == (B, 8, C) and logits.shape == (B, 8, C)
    assert encoded_len.shape == (B,)

    # Sanity 2: log_softmax rows sum to 1 in prob space (bf16 log_probs ->
    # loose tolerance).
    row_sums = jnp.sum(jnp.exp(log_probs.astype(jnp.float32)), axis=-1)
    assert bool(jnp.all(jnp.abs(row_sums - 1.0) < 2e-2))

    # Sanity 3: pure-JAX f32 reference (bf16 matmuls + bf16 log_probs -> loose
    # tolerance).
    x_ref = input_signal[:, :8, :]
    enc_ref = jnp.maximum(
        jnp.einsum("btf,fd->btd", x_ref, params["w_enc"]) + params["b_enc"],
        0.0)
    logits_ref = (jnp.einsum("btd,dc->btc", enc_ref, params["w_dec"])
                  + params["b_dec"])
    logp_ref = jax.nn.log_softmax(logits_ref, axis=-1)
    err_lp = float(jnp.max(jnp.abs(log_probs.astype(jnp.float32) - logp_ref)))
    err_lg = float(jnp.max(jnp.abs(logits.astype(jnp.float32) - logits_ref)))
    assert err_lp < 5e-2, f"log_probs mismatch vs reference: {err_lp}"
    assert err_lg < 5e-2, f"logits mismatch vs reference: {err_lg}"

    print("KERNEL_OK")
</pallas_src>

<mosaic_0001>
module attributes {stable_mosaic.version = 11 : i64} {
  func.func @_ctc_finetune_kernel(%arg0: i32, %arg1: i32, %arg2: memref<1x16x128xbf16, #tpu.memory_space<vmem>>, %arg3: memref<128x128xbf16, #tpu.memory_space<vmem>>, %arg4: memref<1x128xf32, #tpu.memory_space<vmem>>, %arg5: memref<128x128xbf16, #tpu.memory_space<vmem>>, %arg6: memref<1x128xf32, #tpu.memory_space<vmem>>, %arg7: memref<1x16x128xbf16, #tpu.memory_space<vmem>>, %arg8: memref<1x16x128xf32, #tpu.memory_space<vmem>>) attributes {dimension_semantics = [#tpu.dimension_semantics<parallel>, #tpu.dimension_semantics<parallel>], iteration_bounds = array<i64: 2, 1>, scalar_prefetch = 0 : i64, scratch_operands = 0 : i64, tpu.core_type = #tpu.core_type<tc>, window_params = [{transform_indices = @transform_0, window_bounds = array<i64: 1, 16, 128>}, {pipeline_mode = #tpu.pipeline_mode<synchronous>, transform_indices = @transform_1, window_bounds = array<i64: 128, 128>}, {pipeline_mode = #tpu.pipeline_mode<synchronous>, transform_indices = @transform_2, window_bounds = array<i64: 1, 128>}, {pipeline_mode = #tpu.pipeline_mode<synchronous>, transform_indices = @transform_3, window_bounds = array<i64: 128, 128>}, {pipeline_mode = #tpu.pipeline_mode<synchronous>, transform_indices = @transform_4, window_bounds = array<i64: 1, 128>}, {transform_indices = @transform_5, window_bounds = array<i64: 1, 16, 128>}, {transform_indices = @transform_6, window_bounds = array<i64: 1, 16, 128>}]} {
    %c0 = arith.constant 0 : index
    %c0_0 = arith.constant 0 : index
    %c0_1 = arith.constant 0 : index
    %0 = vector.load %arg2[%c0, %c0_0, %c0_1] : memref<1x16x128xbf16, #tpu.memory_space<vmem>>, vector<1x16x128xbf16>
    %1 = vector.shape_cast %0 : vector<1x16x128xbf16> to vector<16x128xbf16>
    %c0_2 = arith.constant 0 : index
    %c0_3 = arith.constant 0 : index
    %2 = vector.load %arg3[%c0_2, %c0_3] : memref<128x128xbf16, #tpu.memory_space<vmem>>, vector<128x128xbf16>
    %cst = arith.constant dense<0.000000e+00> : vector<16x128xf32>
    %3 = tpu.matmul %1, %2, %cst {dimension_numbers = #tpu.dot_dimension_numbers<[1], [0], [0], [1], [0, 0, 1, 1], [], []>} : vector<16x128xbf16>, vector<128x128xbf16>, vector<16x128xf32> -> vector<16x128xf32>
    %c0_4 = arith.constant 0 : index
    %c0_5 = arith.constant 0 : index
    %4 = vector.load %arg4[%c0_4, %c0_5] : memref<1x128xf32, #tpu.memory_space<vmem>>, vector<1x128xf32>
    %5 = vector.broadcast %4 : vector<1x128xf32> to vector<16x128xf32>
    %6 = arith.addf %3, %5 : vector<16x128xf32>
    %cst_6 = arith.constant 0.000000e+00 : f32
    %7 = vector.broadcast %cst_6 : f32 to vector<16x128xf32>
    %8 = arith.maximumf %6, %7 : vector<16x128xf32>
    %9 = arith.truncf %8 : vector<16x128xf32> to vector<16x128xbf16>
    %c0_7 = arith.constant 0 : index
    %c0_8 = arith.constant 0 : index
    %10 = vector.load %arg5[%c0_7, %c0_8] : memref<128x128xbf16, #tpu.memory_space<vmem>>, vector<128x128xbf16>
    %cst_9 = arith.constant dense<0.000000e+00> : vector<16x128xf32>
    %11 = tpu.matmul %9, %10, %cst_9 {dimension_numbers = #tpu.dot_dimension_numbers<[1], [0], [0], [1], [0, 0, 1, 1], [], []>} : vector<16x128xbf16>, vector<128x128xbf16>, vector<16x128xf32> -> vector<16x128xf32>
    %c0_10 = arith.constant 0 : index
    %c0_11 = arith.constant 0 : index
    %12 = vector.load %arg6[%c0_10, %c0_11] : memref<1x128xf32, #tpu.memory_space<vmem>>, vector<1x128xf32>
    %13 = vector.broadcast %12 : vector<1x128xf32> to vector<16x128xf32>
    %14 = arith.addf %11, %13 : vector<16x128xf32>
    %cst_12 = arith.constant dense<0xFF800000> : vector<16xf32>
    %15 = vector.multi_reduction <maximumf>, %14, %cst_12 [1] : vector<16x128xf32> to vector<16xf32>
    %16 = vector.shape_cast %15 : vector<16xf32> to vector<16x1xf32>
    %17 = vector.broadcast %16 : vector<16x1xf32> to vector<16x128xf32>
    %18 = arith.subf %14, %17 : vector<16x128xf32>
    %19 = math.exp %18 : vector<16x128xf32>
    %cst_13 = arith.constant dense<0.000000e+00> : vector<16xf32>
    %20 = vector.multi_reduction <add>, %19, %cst_13 [1] : vector<16x128xf32> to vector<16xf32>
    %21 = vector.shape_cast %20 : vector<16xf32> to vector<16x1xf32>
    %22 = math.log %21 : vector<16x1xf32>
    %23 = vector.broadcast %22 : vector<16x1xf32> to vector<16x128xf32>
    %24 = arith.subf %18, %23 : vector<16x128xf32>
    %25 = arith.truncf %24 : vector<16x128xf32> to vector<16x128xbf16>
    %c0_14 = arith.constant 0 : index
    %c0_15 = arith.constant 0 : index
    %c0_16 = arith.constant 0 : index
    %26 = vector.load %arg7[%c0_14, %c0_15, %c0_16] : memref<1x16x128xbf16, #tpu.memory_space<vmem>>, vector<1x16x128xbf16>
    %27 = vector.shape_cast %26 : vector<1x16x128xbf16> to vector<16x128xbf16>
    %28 = vector.shape_cast %25 : vector<16x128xbf16> to vector<1x16x128xbf16>
    tpu.vector_store %arg7[%c0_14, %c0_15, %c0_16], %28 {strides = array<i32>} : memref<1x16x128xbf16, #tpu.memory_space<vmem>>, vector<1x16x128xbf16>,
    %29 = arith.addf %16, %22 : vector<16x1xf32>
    %30 = vector.shape_cast %29 : vector<16x1xf32> to vector<16x1xf32>
    %31 = vector.broadcast %30 : vector<16x1xf32> to vector<16x128xf32>
    %c0_17 = arith.constant 0 : index
    %c0_18 = arith.constant 0 : index
    %c0_19 = arith.constant 0 : index
    %32 = vector.load %arg8[%c0_17, %c0_18, %c0_19] : memref<1x16x128xf32, #tpu.memory_space<vmem>>, vector<1x16x128xf32>
    %33 = vector.shape_cast %32 : vector<1x16x128xf32> to vector<16x128xf32>
    %34 = vector.shape_cast %31 : vector<16x128xf32> to vector<1x16x128xf32>
    tpu.vector_store %arg8[%c0_17, %c0_18, %c0_19], %34 {strides = array<i32>} : memref<1x16x128xf32, #tpu.memory_space<vmem>>, vector<1x16x128xf32>,
    return
  }
  func.func @transform_0(%arg0: i32, %arg1: i32) -> (i32, i32, i32) {
    %c0_i32 = arith.constant 0 : i32
    %c0_i32_0 = arith.constant 0 : i32
    return %arg0, %arg1, %c0_i32 : i32, i32, i32
  }
  func.func @transform_1(%arg0: i32, %arg1: i32) -> (i32, i32) {
    %c0_i32 = arith.constant 0 : i32
    %c0_i32_0 = arith.constant 0 : i32
    %c0_i32_1 = arith.constant 0 : i32
    return %c0_i32, %c0_i32_0 : i32, i32
  }
  func.func @transform_2(%arg0: i32, %arg1: i32) -> (i32, i32) {
    %c0_i32 = arith.constant 0 : i32
    %c0_i32_0 = arith.constant 0 : i32
    %c0_i32_1 = arith.constant 0 : i32
    return %c0_i32, %c0_i32_0 : i32, i32
  }
  func.func @transform_3(%arg0: i32, %arg1: i32) -> (i32, i32) {
    %c0_i32 = arith.constant 0 : i32
    %c0_i32_0 = arith.constant 0 : i32
    %c0_i32_1 = arith.constant 0 : i32
    return %c0_i32, %c0_i32_0 : i32, i32
  }
  func.func @transform_4(%arg0: i32, %arg1: i32) -> (i32, i32) {
    %c0_i32 = arith.constant 0 : i32
    %c0_i32_0 = arith.constant 0 : i32
    %c0_i32_1 = arith.constant 0 : i32
    return %c0_i32, %c0_i32_0 : i32, i32
  }
  func.func @transform_5(%arg0: i32, %arg1: i32) -> (i32, i32, i32) {
    %c0_i32 = arith.constant 0 : i32
    %c0_i32_0 = arith.constant 0 : i32
    return %arg0, %arg1, %c0_i32 : i32, i32, i32
  }
  func.func @transform_6(%arg0: i32, %arg1: i32) -> (i32, i32, i32) {
    %c0_i32 = arith.constant 0 : i32
    %c0_i32_0 = arith.constant 0 : i32
    return %arg0, %arg1, %c0_i32 : i32, i32, i32
  }
}

module attributes {stable_mosaic.version = 11 : i64} {
  func.func @_ctc_finetune_kernel(%arg0: i32, %arg1: i32, %arg2: memref<1x16x128xbf16, #tpu.memory_space<vmem>>, %arg3: memref<128x128xbf16, #tpu.memory_space<vmem>>, %arg4: memref<1x128xf32, #tpu.memory_space<vmem>>, %arg5: memref<128x128xbf16, #tpu.memory_space<vmem>>, %arg6: memref<1x128xf32, #tpu.memory_space<vmem>>, %arg7: memref<1x16x128xbf16, #tpu.memory_space<vmem>>, %arg8: memref<1x16x128xf32, #tpu.memory_space<vmem>>) attributes {dimension_semantics = [#tpu.dimension_semantics<parallel>, #tpu.dimension_semantics<parallel>], iteration_bounds = array<i64: 2, 1>, scalar_prefetch = 0 : i64, scratch_operands = 0 : i64, tpu.core_type = #tpu.core_type<tc>, window_params = [{transform_indices = @transform_0, window_bounds = array<i64: 1, 16, 128>}, {pipeline_mode = #tpu.pipeline_mode<synchronous>, transform_indices = @transform_1, window_bounds = array<i64: 128, 128>}, {pipeline_mode = #tpu.pipeline_mode<synchronous>, transform_indices = @transform_2, window_bounds = array<i64: 1, 128>}, {pipeline_mode = #tpu.pipeline_mode<synchronous>, transform_indices = @transform_3, window_bounds = array<i64: 128, 128>}, {pipeline_mode = #tpu.pipeline_mode<synchronous>, transform_indices = @transform_4, window_bounds = array<i64: 1, 128>}, {transform_indices = @transform_5, window_bounds = array<i64: 1, 16, 128>}, {transform_indices = @transform_6, window_bounds = array<i64: 1, 16, 128>}]} {
    %c0 = arith.constant 0 : index
    %c0_0 = arith.constant 0 : index
    %c0_1 = arith.constant 0 : index
    %0 = vector.load %arg2[%c0, %c0_0, %c0_1] : memref<1x16x128xbf16, #tpu.memory_space<vmem>>, vector<1x16x128xbf16>
    %1 = vector.shape_cast %0 : vector<1x16x128xbf16> to vector<16x128xbf16>
    %c0_2 = arith.constant 0 : index
    %c0_3 = arith.constant 0 : index
    %2 = vector.load %arg3[%c0_2, %c0_3] : memref<128x128xbf16, #tpu.memory_space<vmem>>, vector<128x128xbf16>
    %cst = arith.constant dense<0.000000e+00> : vector<16x128xf32>
    %3 = tpu.matmul %1, %2, %cst {dimension_numbers = #tpu.dot_dimension_numbers<[1], [0], [0], [1], [0, 0, 1, 1], [], []>} : vector<16x128xbf16>, vector<128x128xbf16>, vector<16x128xf32> -> vector<16x128xf32>
    %c0_4 = arith.constant 0 : index
    %c0_5 = arith.constant 0 : index
    %4 = vector.load %arg4[%c0_4, %c0_5] : memref<1x128xf32, #tpu.memory_space<vmem>>, vector<1x128xf32>
    %5 = vector.broadcast %4 : vector<1x128xf32> to vector<16x128xf32>
    %6 = arith.addf %3, %5 : vector<16x128xf32>
    %cst_6 = arith.constant 0.000000e+00 : f32
    %7 = vector.broadcast %cst_6 : f32 to vector<16x128xf32>
    %8 = arith.maximumf %6, %7 : vector<16x128xf32>
    %9 = arith.truncf %8 : vector<16x128xf32> to vector<16x128xbf16>
    %c0_7 = arith.constant 0 : index
    %c0_8 = arith.constant 0 : index
    %10 = vector.load %arg5[%c0_7, %c0_8] : memref<128x128xbf16, #tpu.memory_space<vmem>>, vector<128x128xbf16>
    %cst_9 = arith.constant dense<0.000000e+00> : vector<16x128xf32>
    %11 = tpu.matmul %9, %10, %cst_9 {dimension_numbers = #tpu.dot_dimension_numbers<[1], [0], [0], [1], [0, 0, 1, 1], [], []>} : vector<16x128xbf16>, vector<128x128xbf16>, vector<16x128xf32> -> vector<16x128xf32>
    %c0_10 = arith.constant 0 : index
    %c0_11 = arith.constant 0 : index
    %12 = vector.load %arg6[%c0_10, %c0_11] : memref<1x128xf32, #tpu.memory_space<vmem>>, vector<1x128xf32>
    %13 = vector.broadcast %12 : vector<1x128xf32> to vector<16x128xf32>
    %14 = arith.addf %11, %13 : vector<16x128xf32>
    %cst_12 = arith.constant dense<0xFF800000> : vector<16xf32>
    %15 = vector.multi_reduction <maximumf>, %14, %cst_12 [1] : vector<16x128xf32> to vector<16xf32>
    %16 = vector.shape_cast %15 : vector<16xf32> to vector<16x1xf32>
    %17 = vector.broadcast %16 : vector<16x1xf32> to vector<16x128xf32>
    %18 = arith.subf %14, %17 : vector<16x128xf32>
    %19 = math.exp %18 : vector<16x128xf32>
    %cst_13 = arith.constant dense<0.000000e+00> : vector<16xf32>
    %20 = vector.multi_reduction <add>, %19, %cst_13 [1] : vector<16x128xf32> to vector<16xf32>
    %21 = vector.shape_cast %20 : vector<16xf32> to vector<16x1xf32>
    %22 = math.log %21 : vector<16x1xf32>
    %23 = vector.broadcast %22 : vector<16x1xf32> to vector<16x128xf32>
    %24 = arith.subf %18, %23 : vector<16x128xf32>
    %25 = arith.truncf %24 : vector<16x128xf32> to vector<16x128xbf16>
    %c0_14 = arith.constant 0 : index
    %c0_15 = arith.constant 0 : index
    %c0_16 = arith.constant 0 : index
    %26 = vector.load %arg7[%c0_14, %c0_15, %c0_16] : memref<1x16x128xbf16, #tpu.memory_space<vmem>>, vector<1x16x128xbf16>
    %27 = vector.shape_cast %26 : vector<1x16x128xbf16> to vector<16x128xbf16>
    %28 = vector.shape_cast %25 : vector<16x128xbf16> to vector<1x16x128xbf16>
    tpu.vector_store %arg7[%c0_14, %c0_15, %c0_16], %28 {strides = array<i32>} : memref<1x16x128xbf16, #tpu.memory_space<vmem>>, vector<1x16x128xbf16>,
    %29 = arith.addf %16, %22 : vector<16x1xf32>
    %30 = vector.shape_cast %29 : vector<16x1xf32> to vector<16x1xf32>
    %31 = vector.broadcast %30 : vector<16x1xf32> to vector<16x128xf32>
    %c0_17 = arith.constant 0 : index
    %c0_18 = arith.constant 0 : index
    %c0_19 = arith.constant 0 : index
    %32 = vector.load %arg8[%c0_17, %c0_18, %c0_19] : memref<1x16x128xf32, #tpu.memory_space<vmem>>, vector<1x16x128xf32>
    %33 = vector.shape_cast %32 : vector<1x16x128xf32> to vector<16x128xf32>
    %34 = vector.shape_cast %31 : vector<16x128xf32> to vector<1x16x128xf32>
    tpu.vector_store %arg8[%c0_17, %c0_18, %c0_19], %34 {strides = array<i32>} : memref<1x16x128xf32, #tpu.memory_space<vmem>>, vector<1x16x128xf32>,
    return
  }
  func.func @transform_0(%arg0: i32, %arg1: i32) -> (i32, i32, i32) {
    %c0_i32 = arith.constant 0 : i32
    %c0_i32_0 = arith.constant 0 : i32
    return %arg0, %arg1, %c0_i32 : i32, i32, i32
  }
  func.func @transform_1(%arg0: i32, %arg1: i32) -> (i32, i32) {
    %c0_i32 = arith.constant 0 : i32
    %c0_i32_0 = arith.constant 0 : i32
    %c0_i32_1 = arith.constant 0 : i32
    return %c0_i32, %c0_i32_0 : i32, i32
  }
  func.func @transform_2(%arg0: i32, %arg1: i32) -> (i32, i32) {
    %c0_i32 = arith.constant 0 : i32
    %c0_i32_0 = arith.constant 0 : i32
    %c0_i32_1 = arith.constant 0 : i32
    return %c0_i32, %c0_i32_0 : i32, i32
  }
  func.func @transform_3(%arg0: i32, %arg1: i32) -> (i32, i32) {
    %c0_i32 = arith.constant 0 : i32
    %c0_i32_0 = arith.constant 0 : i32
    %c0_i32_1 = arith.constant 0 : i32
    return %c0_i32, %c0_i32_0 : i32, i32
  }
  func.func @transform_4(%arg0: i32, %arg1: i32) -> (i32, i32) {
    %c0_i32 = arith.constant 0 : i32
    %c0_i32_0 = arith.constant 0 : i32
    %c0_i32_1 = arith.constant 0 : i32
    return %c0_i32, %c0_i32_0 : i32, i32
  }
  func.func @transform_5(%arg0: i32, %arg1: i32) -> (i32, i32, i32) {
    %c0_i32 = arith.constant 0 : i32
    %c0_i32_0 = arith.constant 0 : i32
    return %arg0, %arg1, %c0_i32 : i32, i32, i32
  }
  func.func @transform_6(%arg0: i32, %arg1: i32) -> (i32, i32, i32) {
    %c0_i32 = arith.constant 0 : i32
    %c0_i32_0 = arith.constant 0 : i32
    return %arg0, %arg1, %c0_i32 : i32, i32, i32
  }
}

</mosaic_0001>

<llo_original>
// kernel: _ctc_core.1
$region0: #{_ctc_core.1}
  #allocation0 [shape = 'u32[]', space=smem, size = 0x4, offset = 0x4, fixed_abs, tag = 'smem constant byte address 0x4 - core index']
  #allocation1 [shape = 'u32[144,128]{1,0:T(1,128)}', space=vmem, size = 0x12000, scoped, tag = 'internal scratch']
  %s0 = inlined_call_operand.vmem [shape: bf16[2,16,128], index: 0, kind: input, shape index: {}]
  %s1 = inlined_call_operand.hbm [shape: bf16[128,128], index: 1, kind: input, shape index: {}]
  %s2 = inlined_call_operand.vmem [shape: f32[1,128], index: 2, kind: input, shape index: {}]
  %s3 = inlined_call_operand.hbm [shape: bf16[128,128], index: 3, kind: input, shape index: {}]
  %s4 = inlined_call_operand.vmem [shape: f32[1,128], index: 4, kind: input, shape index: {}]
  %s5 = inlined_call_operand.vmem [shape: bf16[2,16,128], index: 5, kind: output, shape index: {0}]
  %s6 = inlined_call_operand.vmem [shape: f32[2,16,128], index: 6, kind: output, shape index: {1}]
  %7 = xla_tuple %s5, %s6
  %s8 = sld [smem:[#allocation0]]
  $region69: #{_ctc_core.1} parent=0
    _
  %s10 = ssub.s32 1, %s8
  %s11 = scalar_select 0, %s10, %s8
  $region1: #{_ctc_core.1} parent=0
    #allocation2 [shape = 'u8[32768]{0}', space=vmem, size = 0x8000, scoped, tag = 'input window, operand 1, single buffered']
    #allocation3 [shape = 's32[2]{0}', space=sflag, size = 0x8, scoped, tag = 'scoped memory for _ctc_core.1']
    #allocation4 [shape = 'u8[32768]{0}', space=vmem, size = 0x8000, scoped, tag = 'input window, operand 3, single buffered']
    #allocation5 [shape = 's32[1]{0}', space=sflag, size = 0x4, scoped, tag = 'scoped memory for _ctc_core.1']
    %12 = vsyncpa [#allocation3], 0
    %13 = vsyncpa [#allocation5], 0
    loop: start=0, step=1, limit=4
    $region2: #{_ctc_core.1} parent=1 // loop_pre_header
      _
    $region3: #{_ctc_core.1} parent=1 // loop_header
      %s15 = sphi 0, %s19
      %p16 = scmp.ge.s32.totalorder %s15, 4
      %s22 = sphi 0, %s34
      %s23 = sphi 0, %s30
      %s24 = sphi 0, %s22
      %s25 = sphi 0, %s23
      %s26 = sphi 0, %s24
      %s27 = sphi 0, %s25
      %s39 = sphi 0, %s41
      %s42 = sphi 0, %s39
      %s43 = sphi 0, %s42
      %s59 = sphi 0, %s43
      %s63 = sphi 0, %s63
      %s65 = sphi 0, %s63
      %s66 = sphi 0, %s65
      %s80 = sphi 0, %s66
      %s84 = sphi 0, %s84
      %s86 = sphi 0, %s84
      %s87 = sphi 0, %s86
      %s101 = sphi 0, %s87
      %s105 = sphi 0, %s105
      %s107 = sphi 0, %s105
      %s108 = sphi 0, %s107
      %s122 = sphi 0, %s108
      %s126 = sphi 0, %s126
      %s128 = sphi 0, %s126
      %s129 = sphi 0, %s128
      %s143 = sphi 0, %s129
      %s151 = sphi 0, %s153
      %s154 = sphi 0, %s151
      %s155 = sphi 0, %s154
      %s171 = sphi 0, %s155
      %s179 = sphi 0, %s181
      %s182 = sphi 0, %s179
      %s183 = sphi 0, %s182
      %s199 = sphi 0, %s183
    $region4: #{_ctc_core.1} parent=1 // loop_header_branch
      %18 = sbr.rel (%p16) target = $region8
    $region5: #{_ctc_core.1} parent=1 // loop_body
      %s20 = ssub.s32 %s15, 1
      %s21 = ssub.s32 %s15, 2
      %s28 = sadd.s32 1, %s23
      %p29 = scmp.ge.s32.totalorder %s28, 1
      %s30 = scalar_select %p29, 0, %s28
      %s31 = sadd.s32 1, %s22
      %s32 = scalar_select %p29, %s31, %s22
      %p33 = scmp.ge.s32.totalorder %s32, 2
      %s34 = scalar_select %p33, 0, %s32
      %s35 = ssub.s32 %s22, %s34
      %s36 = ssub.s32 %s23, %s30
      %s37 = sor.u32 %s35, %s36
      %p38 = scmp.eq.s32.totalorder %s37, 0
      %s40 = sadd.s32 %s39, 1
      %s41 = scalar_select %p38, %s39, %s40
      %p44 = pneg %p38
      %p45 = scmp.eq.s32.totalorder %s15, 1
      %p46 = por %p44, %p45
      %p47 = scmp.ne.s32.totalorder %s39, %s42
      %p48 = scmp.eq.s32.totalorder %s15, 0
      %p49 = por %p47, %p48
      %p50 = scmp.ne.s32.totalorder %s39, %s42
      %p51 = scmp.eq.s32.totalorder %s20, 1
      %p52 = por %p50, %p51
      %p53 = scmp.ne.s32.totalorder %s42, %s43
      %p54 = scmp.eq.s32.totalorder %s20, 0
      %p55 = por %p53, %p54
      %p56 = scmp.ne.s32.totalorder %s42, %s43
      %p57 = scmp.eq.s32.totalorder %s21, 1
      %p58 = por %p56, %p57
      %p60 = scmp.ne.s32.totalorder %s43, %s59
      %p61 = scmp.eq.s32.totalorder %s21, 0
      %p62 = por %p60, %p61
      %s64 = sadd.s32 %s63, 1
      %p67 = scmp.eq.s32.totalorder %s15, 1
      %p68 = scmp.ne.s32.totalorder %s63, %s65
      %p69 = scmp.eq.s32.totalorder %s15, 0
      %p70 = por %p68, %p69
      %p71 = scmp.ne.s32.totalorder %s63, %s65
      %p72 = scmp.eq.s32.totalorder %s20, 1
      %p73 = por %p71, %p72
      %p74 = scmp.ne.s32.totalorder %s65, %s66
      %p75 = scmp.eq.s32.totalorder %s20, 0
      %p76 = por %p74, %p75
      %p77 = scmp.ne.s32.totalorder %s65, %s66
      %p78 = scmp.eq.s32.totalorder %s21, 1
      %p79 = por %p77, %p78
      %p81 = scmp.ne.s32.totalorder %s66, %s80
      %p82 = scmp.eq.s32.totalorder %s21, 0
      %p83 = por %p81, %p82
      %s85 = sadd.s32 %s84, 1
      %p88 = scmp.eq.s32.totalorder %s15, 1
      %p89 = scmp.ne.s32.totalorder %s84, %s86
      %p90 = scmp.eq.s32.totalorder %s15, 0
      %p91 = por %p89, %p90
      %p92 = scmp.ne.s32.totalorder %s84, %s86
      %p93 = scmp.eq.s32.totalorder %s20, 1
      %p94 = por %p92, %p93
      %p95 = scmp.ne.s32.totalorder %s86, %s87
      %p96 = scmp.eq.s32.totalorder %s20, 0
      %p97 = por %p95, %p96
      %p98 = scmp.ne.s32.totalorder %s86, %s87
      %p99 = scmp.eq.s32.totalorder %s21, 1
      %p100 = por %p98, %p99
      %p102 = scmp.ne.s32.totalorder %s87, %s101
      %p103 = scmp.eq.s32.totalorder %s21, 0
      %p104 = por %p102, %p103
      %s106 = sadd.s32 %s105, 1
      %p109 = scmp.eq.s32.totalorder %s15, 1
      %p110 = scmp.ne.s32.totalorder %s105, %s107
      %p111 = scmp.eq.s32.totalorder %s15, 0
      %p112 = por %p110, %p111
      %p113 = scmp.ne.s32.totalorder %s105, %s107
      %p114 = scmp.eq.s32.totalorder %s20, 1
      %p115 = por %p113, %p114
      %p116 = scmp.ne.s32.totalorder %s107, %s108
      %p117 = scmp.eq.s32.totalorder %s20, 0
      %p118 = por %p116, %p117
      %p119 = scmp.ne.s32.totalorder %s107, %s108
      %p120 = scmp.eq.s32.totalorder %s21, 1
      %p121 = por %p119, %p120
      %p123 = scmp.ne.s32.totalorder %s108, %s122
      %p124 = scmp.eq.s32.totalorder %s21, 0
      %p125 = por %p123, %p124
      %s127 = sadd.s32 %s126, 1
      %p130 = scmp.eq.s32.totalorder %s15, 1
      %p131 = scmp.ne.s32.totalorder %s126, %s128
      %p132 = scmp.eq.s32.totalorder %s15, 0
      %p133 = por %p131, %p132
      %p134 = scmp.ne.s32.totalorder %s126, %s128
      %p135 = scmp.eq.s32.totalorder %s20, 1
      %p136 = por %p134, %p135
      %p137 = scmp.ne.s32.totalorder %s128, %s129
      %p138 = scmp.eq.s32.totalorder %s20, 0
      %p139 = por %p137, %p138
      %p140 = scmp.ne.s32.totalorder %s128, %s129
      %p141 = scmp.eq.s32.totalorder %s21, 1
      %p142 = por %p140, %p141
      %p144 = scmp.ne.s32.totalorder %s129, %s143
      %p145 = scmp.eq.s32.totalorder %s21, 0
      %p146 = por %p144, %p145
      %s147 = ssub.s32 %s22, %s34
      %s148 = ssub.s32 %s23, %s30
      %s149 = sor.u32 %s147, %s148
      %p150 = scmp.eq.s32.totalorder %s149, 0
      %s152 = sadd.s32 %s151, 1
      %s153 = scalar_select %p150, %s151, %s152
      %p156 = pneg %p150
      %p157 = scmp.eq.s32.totalorder %s15, 1
      %p158 = por %p156, %p157
      %p159 = scmp.ne.s32.totalorder %s151, %s154
      %p160 = scmp.eq.s32.totalorder %s15, 0
      %p161 = por %p159, %p160
      %p162 = scmp.ne.s32.totalorder %s151, %s154
      %p163 = scmp.eq.s32.totalorder %s20, 1
      %p164 = por %p162, %p163
      %p165 = scmp.ne.s32.totalorder %s154, %s155
      %p166 = scmp.eq.s32.totalorder %s20, 0
      %p167 = por %p165, %p166
      %p168 = scmp.ne.s32.totalorder %s154, %s155
      %p169 = scmp.eq.s32.totalorder %s21, 1
      %p170 = por %p168, %p169
      %p172 = scmp.ne.s32.totalorder %s155, %s171
      %p173 = scmp.eq.s32.totalorder %s21, 0
      %p174 = por %p172, %p173
      %s175 = ssub.s32 %s22, %s34
      %s176 = ssub.s32 %s23, %s30
      %s177 = sor.u32 %s175, %s176
      %p178 = scmp.eq.s32.totalorder %s177, 0
      %s180 = sadd.s32 %s179, 1
      %s181 = scalar_select %p178, %s179, %s180
      %p184 = pneg %p178
      %p185 = scmp.eq.s32.totalorder %s15, 1
      %p186 = por %p184, %p185
      %p187 = scmp.ne.s32.totalorder %s179, %s182
      %p188 = scmp.eq.s32.totalorder %s15, 0
      %p189 = por %p187, %p188
      %p190 = scmp.ne.s32.totalorder %s179, %s182
      %p191 = scmp.eq.s32.totalorder %s20, 1
      %p192 = por %p190, %p191
      %p193 = scmp.ne.s32.totalorder %s182, %s183
      %p194 = scmp.eq.s32.totalorder %s20, 0
      %p195 = por %p193, %p194
      %p196 = scmp.ne.s32.totalorder %s182, %s183
      %p197 = scmp.eq.s32.totalorder %s21, 1
      %p198 = por %p196, %p197
      %p200 = scmp.ne.s32.totalorder %s183, %s199
      %p201 = scmp.eq.s32.totalorder %s21, 0
      %p202 = por %p200, %p201
      %p203 = scmp.le.s32.totalorder 1, %s15
      %p204 = scmp.lt.s32.totalorder %s15, 3
      %p205 = pnand %p203, %p204
      %p206 = pneg %p205
      // Predicated region
      $region9: #{_ctc_core.1} parent=5 // pred_check
        _
      $region10: #{_ctc_core.1} parent=5 // pred_check_branch
        %208 = sbr.rel (%p205) target = $region12
      $region11: #{_ctc_core.1} parent=5 // pred_region
        %s209 = ssub.s32 %s15, 1
        // Predicated region
        $region13: #{_ctc_core.1} parent=11 // pred_check
          %p210 = pneg %p76
        $region14: #{_ctc_core.1} parent=11 // pred_check_branch
          %212 = sbr.rel (%p210) target = $region16
        $region15: #{_ctc_core.1} parent=11 // pred_region
          %s214 = ssub.s32 1024, 1024
          %215 = vsyncadd [#allocation3], %s214
          %s216 = sshll.u32 [#allocation2], 4
          %s217 = int_to_ptr.vmem [resolvable:$true] %s216
          %222 = dma.hbm_to_vmem [thread:$0]  %s1, 1024, %s217, [#allocation3], 64, 64, 4
        $region16: #{_ctc_core.1} parent=11 // pred_fallthru
          _
        // Predicated region
        $region17: #{_ctc_core.1} parent=11 // pred_check
          %p223 = pneg %p97
        $region18: #{_ctc_core.1} parent=11 // pred_check_branch
          %225 = sbr.rel (%p223) target = $region20
        $region19: #{_ctc_core.1} parent=11 // pred_region
          _
        $region20: #{_ctc_core.1} parent=11 // pred_fallthru
          _
        // Predicated region
        $region21: #{_ctc_core.1} parent=11 // pred_check
          %p226 = pneg %p118
        $region22: #{_ctc_core.1} parent=11 // pred_check_branch
          %228 = sbr.rel (%p226) target = $region24
        $region23: #{_ctc_core.1} parent=11 // pred_region
          %s230 = ssub.s32 1024, 1024
          %231 = vsyncadd [#allocation5], %s230
          %s232 = sshll.u32 [#allocation4], 4
          %s233 = int_to_ptr.vmem [resolvable:$true] %s232
          %238 = dma.hbm_to_vmem [thread:$0]  %s3, 1024, %s233, [#allocation5], 64, 64, 4
        $region24: #{_ctc_core.1} parent=11 // pred_fallthru
          _
        // Predicated region
        $region25: #{_ctc_core.1} parent=11 // pred_check
          %p239 = pneg %p139
        $region26: #{_ctc_core.1} parent=11 // pred_check_branch
          %241 = sbr.rel (%p239) target = $region28
        $region27: #{_ctc_core.1} parent=11 // pred_region
          _
        $region28: #{_ctc_core.1} parent=11 // pred_fallthru
          _
      $region12: #{_ctc_core.1} parent=5 // pred_fallthru
        _
      %p242 = scmp.lt.s32.totalorder %s15, 2
      // Predicated region
      $region29: #{_ctc_core.1} parent=5 // pred_check
        %p243 = pneg %p242
      $region30: #{_ctc_core.1} parent=5 // pred_check_branch
        %245 = sbr.rel (%p243) target = $region32
      $region31: #{_ctc_core.1} parent=5 // pred_region
        // Predicated region
        $region33: #{_ctc_core.1} parent=31 // pred_check
          %p246 = pneg %p49
        $region34: #{_ctc_core.1} parent=31 // pred_check_branch
          %248 = sbr.rel (%p246) target = $region36
        $region35: #{_ctc_core.1} parent=31 // pred_region
          %s249 = smul.u32 2, %s23
          %p250 = scmp.lt.s32.totalorder %s22, 1
          %s251 = scalar_select %p250, %s22, 1
          %p252 = scmp.lt.s32.totalorder %s249, 1
          %s253 = scalar_select %p252, %s249, 1
          %s254 = smul.addr %s251, 2
          %s255 = sadd.s32 %s253, %s254
          %s256 = smul.addr %s255, 4
          %s257 = scalar_lea.vmem %s0, %s256
          %s258 = smul.u32 2, %s23
        $region36: #{_ctc_core.1} parent=31 // pred_fallthru
          _
      $region32: #{_ctc_core.1} parent=5 // pred_fallthru
        _
      %p259 = scmp.le.s32.totalorder 1, %s15
      %p260 = scmp.lt.s32.totalorder %s15, 3
      %p261 = pnand %p259, %p260
      %p262 = pneg %p261
      // Predicated region
      $region37: #{_ctc_core.1} parent=5 // pred_check
        _
      $region38: #{_ctc_core.1} parent=5 // pred_check_branch
        %264 = sbr.rel (%p261) target = $region40
      $region39: #{_ctc_core.1} parent=5 // pred_region
        %s265 = ssub.s32 %s15, 1
        // Predicated region
        $region41: #{_ctc_core.1} parent=39 // pred_check
          %p266 = pneg %p76
        $region42: #{_ctc_core.1} parent=39 // pred_check_branch
          %268 = sbr.rel (%p266) target = $region44
        $region43: #{_ctc_core.1} parent=39 // pred_region
          %269 = dma.done [#allocation3], 1024
        $region44: #{_ctc_core.1} parent=39 // pred_fallthru
          _
        // Predicated region
        $region45: #{_ctc_core.1} parent=39 // pred_check
          %p270 = pneg %p118
        $region46: #{_ctc_core.1} parent=39 // pred_check_branch
          %272 = sbr.rel (%p270) target = $region48
        $region47: #{_ctc_core.1} parent=39 // pred_region
          %273 = dma.done [#allocation5], 1024
        $region48: #{_ctc_core.1} parent=39 // pred_fallthru
          _
        %s274 = smul.u32 2, %s25
        %p275 = scmp.lt.s32.totalorder %s24, 1
        %s276 = scalar_select %p275, %s24, 1
        %p277 = scmp.lt.s32.totalorder %s274, 1
        %s278 = scalar_select %p277, %s274, 1
        %s279 = smul.addr %s276, 2
        %s280 = sadd.s32 %s278, %s279
        %s281 = smul.addr %s280, 4
        %s282 = scalar_lea.vmem %s0, %s281
        %p283 = pneg %p55
        %p284 = pneg %p52
        %p285 = pneg %p76
        %p286 = pneg %p73
        %p287 = pneg %p97
        %p288 = pneg %p94
        %p289 = pneg %p118
        %p290 = pneg %p115
        %p291 = pneg %p139
        %p292 = pneg %p136
        %p293 = pneg %p167
        %p294 = pneg %p164
        %s295 = smul.u32 2, %s25
        %p296 = scmp.lt.s32.totalorder %s24, 1
        %s297 = scalar_select %p296, %s24, 1
        %p298 = scmp.lt.s32.totalorder %s295, 1
        %s299 = scalar_select %p298, %s295, 1
        %s300 = smul.addr %s297, 2
        %s301 = sadd.s32 %s299, %s300
        %s302 = smul.addr %s301, 4
        %s303 = scalar_lea.vmem %s5, %s302
        %p304 = pneg %p195
        %p305 = pneg %p192
        %s306 = smul.u32 2, %s25
        %p307 = scmp.lt.s32.totalorder %s24, 1
        %s308 = scalar_select %p307, %s24, 1
        %p309 = scmp.lt.s32.totalorder %s306, 1
        %s310 = scalar_select %p309, %s306, 1
        %s311 = smul.addr %s308, 2
        %s312 = sadd.s32 %s310, %s311
        %s313 = smul.addr %s312, 8
        %s314 = scalar_lea.vmem %s6, %s313
        %s315 = smul.u32 2, %s25
        %p316 = scmp.lt.s32.totalorder %s24, 1
        %s317 = scalar_select %p316, %s24, 1
        %p318 = scmp.lt.s32.totalorder %s315, 1
        %s319 = scalar_select %p318, %s315, 1
        %s320 = smul.addr %s317, 2
        %s321 = sadd.s32 %s319, %s320
        %s322 = smul.addr %s321, 4
        %s323 = scalar_lea.vmem %s0, %s322
        %s324 = smul.u32 2, %s25
        %s325 = smul.u32 2, %s25
        %p326 = scmp.lt.s32.totalorder %s24, 1
        %s327 = scalar_select %p326, %s24, 1
        %p328 = scmp.lt.s32.totalorder %s325, 1
        %s329 = scalar_select %p328, %s325, 1
        %s330 = smul.addr %s327, 2
        %s331 = sadd.s32 %s329, %s330
        %s332 = smul.addr %s331, 4
        %s333 = scalar_lea.vmem %s5, %s332
        %s334 = smul.u32 2, %s25
        %s335 = smul.u32 2, %s25
        %p336 = scmp.lt.s32.totalorder %s24, 1
        %s337 = scalar_select %p336, %s24, 1
        %p338 = scmp.lt.s32.totalorder %s335, 1
        %s339 = scalar_select %p338, %s335, 1
        %s340 = smul.addr %s337, 2
        %s341 = sadd.s32 %s339, %s340
        %s342 = smul.addr %s341, 8
        %s343 = scalar_lea.vmem %s6, %s342
        %s344 = smul.u32 2, %s25
        %v346 = vld [vmem:[%s323] sm:$0xf]
        %v347 = vld [vmem:[%s323 + $0x4] sm:$0xf]
        %v348 = vld [vmem:[#allocation2] sm:$0xf]
        %v349 = vld [vmem:[#allocation2 + $0x4] sm:$0xf]
        %v350 = vld [vmem:[#allocation2 + $0x8] sm:$0xf]
        %v351 = vld [vmem:[#allocation2 + $0xc] sm:$0xf]
        %v352 = vld [vmem:[#allocation2 + $0x10] sm:$0xf]
        %v353 = vld [vmem:[#allocation2 + $0x14] sm:$0xf]
        %v354 = vld [vmem:[#allocation2 + $0x18] sm:$0xf]
        %v355 = vld [vmem:[#allocation2 + $0x1c] sm:$0xf]
        %v356 = vld [vmem:[#allocation2 + $0x20] sm:$0xf]
        %v357 = vld [vmem:[#allocation2 + $0x24] sm:$0xf]
        %v358 = vld [vmem:[#allocation2 + $0x28] sm:$0xf]
        %v359 = vld [vmem:[#allocation2 + $0x2c] sm:$0xf]
        %v360 = vld [vmem:[#allocation2 + $0x30] sm:$0xf]
        %v361 = vld [vmem:[#allocation2 + $0x34] sm:$0xf]
        %v362 = vld [vmem:[#allocation2 + $0x38] sm:$0xf]
        %v363 = vld [vmem:[#allocation2 + $0x3c] sm:$0xf]
        %v364 = vld [vmem:[%s2] sm:$0x1]
        %v366 = vlaneseq
        %v367 = vshrl.u32 %v366, 7
        %v368 = vsub.s32 0, %v367
        %v369 = vrot.slane %v364, %v368
        %v373 = vunpack.c.l.b16 %v346
        %v374 = vunpack.c.l.b16 %v347
        %v375 = vpack.c.b16 %v374, %v373
        %v393 = vunpack.c.l.b16 %v348
        %v394 = vunpack.c.l.b16 %v349
        %v395 = vunpack.c.l.b16 %v350
        %v396 = vunpack.c.l.b16 %v351
        %v397 = vunpack.c.l.b16 %v352
        %v398 = vunpack.c.l.b16 %v353
        %v399 = vunpack.c.l.b16 %v354
        %v400 = vunpack.c.l.b16 %v355
        %v401 = vunpack.c.l.b16 %v356
        %v402 = vunpack.c.l.b16 %v357
        %v403 = vunpack.c.l.b16 %v358
        %v404 = vunpack.c.l.b16 %v359
        %v405 = vunpack.c.l.b16 %v360
        %v406 = vunpack.c.l.b16 %v361
        %v407 = vunpack.c.l.b16 %v362
        %v408 = vunpack.c.l.b16 %v363
        %v409 = vpack.c.b16 %v394, %v393
        %v410 = vpack.c.b16 %v396, %v395
        %v411 = vpack.c.b16 %v398, %v397
        %v412 = vpack.c.b16 %v400, %v399
        %v413 = vpack.c.b16 %v402, %v401
        %v414 = vpack.c.b16 %v404, %v403
        %v415 = vpack.c.b16 %v406, %v405
        %v416 = vpack.c.b16 %v408, %v407
        %425 = vmatprep.subr.bf16.mxu0 0
        %426 = vmatpush1.bf16.msra.mxu0 %v409
        %427 = vmatprep.subr.bf16.mxu0 0
        %428 = vmatpush1.bf16.msra.mxu0 %v410
        %429 = vmatprep.subr.bf16.mxu0 0
        %430 = vmatpush1.bf16.msra.mxu0 %v411
        %431 = vmatprep.subr.bf16.mxu0 0
        %432 = vmatpush1.bf16.msra.mxu0 %v412
        %433 = vmatprep.subr.bf16.mxu0 0
        %434 = vmatpush1.bf16.msra.mxu0 %v413
        %435 = vmatprep.subr.bf16.mxu0 0
        %436 = vmatpush1.bf16.msra.mxu0 %v414
        %437 = vmatprep.subr.bf16.mxu0 0
        %438 = vmatpush1.bf16.msra.mxu0 %v415
        %439 = vmatprep.subr.bf16.mxu0 0
        %440 = vmatpush1.bf16.msra.mxu0 %v416
        %441 = vmatprep.subr.bf16.mxu0 0
        %442 = vmatpush1.bf16.msra.mxu0 0
        %443 = vmatprep.subr.bf16.mxu0 0
        %444 = vmatpush1.bf16.msra.mxu0 0
        %445 = vmatprep.subr.bf16.mxu0 0
        %446 = vmatpush1.bf16.msra.mxu0 0
        %447 = vmatprep.subr.bf16.mxu0 0
        %448 = vmatpush1.bf16.msra.mxu0 0
        %449 = vmatprep.subr.bf16.mxu0 0
        %450 = vmatpush1.bf16.msra.mxu0 0
        %451 = vmatprep.subr.bf16.mxu0 0
        %452 = vmatpush1.bf16.msra.mxu0 0
        %453 = vmatprep.subr.bf16.mxu0 0
        %454 = vmatpush1.bf16.msra.mxu0 0
        %455 = vmatprep.subr.bf16.mxu0 0
        %456 = vmatpush1.bf16.msra.mxu0 0
        %457 = vmatprep.mubr.bf16.mxu0 0
        %458 = vmatmul.mubr.bf16.gmra.mrb[0].mxu0 %v375
        %v459 = vpop.f32.mrb[0].mxu0
        %v460 = vadd.f32 %v369, %v459
        %v461 = vpop.f32.mrb[0].mxu0
        %v462 = vpop.f32.mrb[0].mxu0
        %v463 = vadd.f32 %v369, %v462
        %v464 = vpop.f32.mrb[0].mxu0
        %465 = vdwg.mxu0
        %v466 = vmax.f32 %v460, 0.0
        %v467 = vmax.f32 %v463, 0.0
        %v468 = vpack.c.bf16 %v467, %v466
        %v469 = vld [vmem:[#allocation4] sm:$0xf]
        %v470 = vld [vmem:[#allocation4 + $0x4] sm:$0xf]
        %v471 = vld [vmem:[#allocation4 + $0x8] sm:$0xf]
        %v472 = vld [vmem:[#allocation4 + $0xc] sm:$0xf]
        %v473 = vld [vmem:[#allocation4 + $0x10] sm:$0xf]
        %v474 = vld [vmem:[#allocation4 + $0x14] sm:$0xf]
        %v475 = vld [vmem:[#allocation4 + $0x18] sm:$0xf]
        %v476 = vld [vmem:[#allocation4 + $0x1c] sm:$0xf]
        %v477 = vld [vmem:[#allocation4 + $0x20] sm:$0xf]
        %v478 = vld [vmem:[#allocation4 + $0x24] sm:$0xf]
        %v479 = vld [vmem:[#allocation4 + $0x28] sm:$0xf]
        %v480 = vld [vmem:[#allocation4 + $0x2c] sm:$0xf]
        %v481 = vld [vmem:[#allocation4 + $0x30] sm:$0xf]
        %v482 = vld [vmem:[#allocation4 + $0x34] sm:$0xf]
        %v483 = vld [vmem:[#allocation4 + $0x38] sm:$0xf]
        %v484 = vld [vmem:[#allocation4 + $0x3c] sm:$0xf]
        %v485 = vld [vmem:[%s4] sm:$0x1]
        %v487 = vlaneseq
        %v488 = vshrl.u32 %v487, 7
        %v489 = vsub.s32 0, %v488
        %v490 = vrot.slane %v485, %v489
        %v508 = vunpack.c.l.b16 %v469
        %v509 = vunpack.c.l.b16 %v470
        %v510 = vunpack.c.l.b16 %v471
        %v511 = vunpack.c.l.b16 %v472
        %v512 = vunpack.c.l.b16 %v473
        %v513 = vunpack.c.l.b16 %v474
        %v514 = vunpack.c.l.b16 %v475
        %v515 = vunpack.c.l.b16 %v476
        %v516 = vunpack.c.l.b16 %v477
        %v517 = vunpack.c.l.b16 %v478
        %v518 = vunpack.c.l.b16 %v479
        %v519 = vunpack.c.l.b16 %v480
        %v520 = vunpack.c.l.b16 %v481
        %v521 = vunpack.c.l.b16 %v482
        %v522 = vunpack.c.l.b16 %v483
        %v523 = vunpack.c.l.b16 %v484
        %v524 = vpack.c.b16 %v509, %v508
        %v525 = vpack.c.b16 %v511, %v510
        %v526 = vpack.c.b16 %v513, %v512
        %v527 = vpack.c.b16 %v515, %v514
        %v528 = vpack.c.b16 %v517, %v516
        %v529 = vpack.c.b16 %v519, %v518
        %v530 = vpack.c.b16 %v521, %v520
        %v531 = vpack.c.b16 %v523, %v522
        %540 = vmatprep.subr.bf16.mxu0 0
        %541 = vmatpush1.bf16.msra.mxu0 %v524
        %542 = vmatprep.subr.bf16.mxu0 0
        %543 = vmatpush1.bf16.msra.mxu0 %v525
        %544 = vmatprep.subr.bf16.mxu0 0
        %545 = vmatpush1.bf16.msra.mxu0 %v526
        %546 = vmatprep.subr.bf16.mxu0 0
        %547 = vmatpush1.bf16.msra.mxu0 %v527
        %548 = vmatprep.subr.bf16.mxu0 0
        %549 = vmatpush1.bf16.msra.mxu0 %v528
        %550 = vmatprep.subr.bf16.mxu0 0
        %551 = vmatpush1.bf16.msra.mxu0 %v529
        %552 = vmatprep.subr.bf16.mxu0 0
        %553 = vmatpush1.bf16.msra.mxu0 %v530
        %554 = vmatprep.subr.bf16.mxu0 0
        %555 = vmatpush1.bf16.msra.mxu0 %v531
        %556 = vmatprep.subr.bf16.mxu0 0
        %557 = vmatpush1.bf16.msra.mxu0 0
        %558 = vmatprep.subr.bf16.mxu0 0
        %559 = vmatpush1.bf16.msra.mxu0 0
        %560 = vmatprep.subr.bf16.mxu0 0
        %561 = vmatpush1.bf16.msra.mxu0 0
        %562 = vmatprep.subr.bf16.mxu0 0
        %563 = vmatpush1.bf16.msra.mxu0 0
        %564 = vmatprep.subr.bf16.mxu0 0
        %565 = vmatpush1.bf16.msra.mxu0 0
        %566 = vmatprep.subr.bf16.mxu0 0
        %567 = vmatpush1.bf16.msra.mxu0 0
        %568 = vmatprep.subr.bf16.mxu0 0
        %569 = vmatpush1.bf16.msra.mxu0 0
        %570 = vmatprep.subr.bf16.mxu0 0
        %571 = vmatpush1.bf16.msra.mxu0 0
        %572 = vmatprep.mubr.bf16.mxu0 0
        %573 = vmatmul.mubr.bf16.gmra.mrb[0].mxu0 %v468
        %v574 = vpop.f32.mrb[0].mxu0
        %v575 = vadd.f32 %v490, %v574
        %v576 = vpop.f32.mrb[0].mxu0
        %v577 = vpop.f32.mrb[0].mxu0
        %v578 = vadd.f32 %v490, %v577
        %v579 = vpop.f32.mrb[0].mxu0
        %580 = vdwg.mxu0
        %581 = vmax.xlane.f32.xlu0 %v575
        %v582 = vpop.xlane.xlu0 %581
        %583 = vmax.xlane.f32.xlu0 %v578
        %v584 = vpop.xlane.xlu0 %583
        %v585 = vsub.f32 %v575, %v582
        %v586 = vsub.f32 %v578, %v584
        %v587 = vmul.f32 %v585, 1.442695
        %v588 = vpow.pop %v587
        %v589 = vmul.f32 %v586, 1.442695
        %v590 = vpow.pop %v589
        %591 = vadd.xlane.f32.xlu0 %v588
        %v592 = vpop.xlane.xlu0 %591
        %593 = vadd.xlane.f32.xlu0 %v590
        %v594 = vpop.xlane.xlu0 %593
        %v595 = vlog2.pop %v592
        %v596 = vmul.f32 %v595, 0.6931472
        %v597 = vlog2.pop %v594
        %v598 = vmul.f32 %v597, 0.6931472
        %v599 = vsub.f32 %v585, %v596
        %v600 = vsub.f32 %v586, %v598
        %v601 = vpack.c.bf16 %v600, %v599
        %v603 = vunpack.c.l.b16 %v601
        %v604 = vunpack.c.h.b16 %v601
        %v605 = vpack.c.b16 %v603, %v603
        %v606 = vpack.c.b16 %v604, %v604
        %609 = vst [vmem:[%s333] sm:$0xf] %v605
        %610 = vst [vmem:[%s333 + $0x4] sm:$0xf] %v606
        %v611 = vadd.f32 %v582, %v596
        %v612 = vadd.f32 %v584, %v598
        %613 = vst [vmem:[%s343] sm:$0xff] %v611
        %614 = vst [vmem:[%s343 + $0x8] sm:$0xff] %v612
        %s615 = smul.u32 2, %s25
        %p616 = scmp.lt.s32.totalorder %s24, 1
        %s617 = scalar_select %p616, %s24, 1
        %p618 = scmp.lt.s32.totalorder %s615, 1
        %s619 = scalar_select %p618, %s615, 1
        %s620 = smul.addr %s617, 2
        %s621 = sadd.s32 %s619, %s620
        %s622 = smul.addr %s621, 4
        %s623 = scalar_lea.vmem %s5, %s622
        %s624 = smul.u32 2, %s25
        %p625 = scmp.lt.s32.totalorder %s24, 1
        %s626 = scalar_select %p625, %s24, 1
        %p627 = scmp.lt.s32.totalorder %s624, 1
        %s628 = scalar_select %p627, %s624, 1
        %s629 = smul.addr %s626, 2
        %s630 = sadd.s32 %s628, %s629
        %s631 = smul.addr %s630, 8
        %s632 = scalar_lea.vmem %s6, %s631
        // Predicated region
        $region49: #{_ctc_core.1} parent=39 // pred_check
          %p633 = pneg %p164
        $region50: #{_ctc_core.1} parent=39 // pred_check_branch
          %635 = sbr.rel (%p633) target = $region52
        $region51: #{_ctc_core.1} parent=39 // pred_region
          %s636 = smul.u32 2, %s25
        $region52: #{_ctc_core.1} parent=39 // pred_fallthru
          _
        // Predicated region
        $region53: #{_ctc_core.1} parent=39 // pred_check
          %p637 = pneg %p192
        $region54: #{_ctc_core.1} parent=39 // pred_check_branch
          %639 = sbr.rel (%p637) target = $region56
        $region55: #{_ctc_core.1} parent=39 // pred_region
          %s640 = smul.u32 2, %s25
        $region56: #{_ctc_core.1} parent=39 // pred_fallthru
          _
      $region40: #{_ctc_core.1} parent=5 // pred_fallthru
        _
      %p641 = scmp.le.s32.totalorder 2, %s15
      // Predicated region
      $region57: #{_ctc_core.1} parent=5 // pred_check
        %p642 = pneg %p641
      $region58: #{_ctc_core.1} parent=5 // pred_check_branch
        %644 = sbr.rel (%p642) target = $region60
      $region59: #{_ctc_core.1} parent=5 // pred_region
        %s645 = ssub.s32 %s15, 2
        // Predicated region
        $region61: #{_ctc_core.1} parent=59 // pred_check
          %p646 = pneg %p170
        $region62: #{_ctc_core.1} parent=59 // pred_check_branch
          %648 = sbr.rel (%p646) target = $region64
        $region63: #{_ctc_core.1} parent=59 // pred_region
          %s649 = smul.u32 2, %s27
          %p650 = scmp.lt.s32.totalorder %s26, 1
          %s651 = scalar_select %p650, %s26, 1
          %p652 = scmp.lt.s32.totalorder %s649, 1
          %s653 = scalar_select %p652, %s649, 1
          %s654 = smul.addr %s651, 2
          %s655 = sadd.s32 %s653, %s654
          %s656 = smul.addr %s655, 4
          %s657 = scalar_lea.vmem %s5, %s656
        $region64: #{_ctc_core.1} parent=59 // pred_fallthru
          _
        // Predicated region
        $region65: #{_ctc_core.1} parent=59 // pred_check
          %p658 = pneg %p198
        $region66: #{_ctc_core.1} parent=59 // pred_check_branch
          %660 = sbr.rel (%p658) target = $region68
        $region67: #{_ctc_core.1} parent=59 // pred_region
          %s661 = smul.u32 2, %s27
          %p662 = scmp.lt.s32.totalorder %s26, 1
          %s663 = scalar_select %p662, %s26, 1
          %p664 = scmp.lt.s32.totalorder %s661, 1
          %s665 = scalar_select %p664, %s661, 1
          %s666 = smul.addr %s663, 2
          %s667 = sadd.s32 %s665, %s666
          %s668 = smul.addr %s667, 8
          %s669 = scalar_lea.vmem %s6, %s668
        $region68: #{_ctc_core.1} parent=59 // pred_fallthru
          _
      $region60: #{_ctc_core.1} parent=5 // pred_fallthru
        _
    $region6: #{_ctc_core.1} parent=1 // loop_footer
      %s19 = sadd.s32 1, %s15
    $region7: #{_ctc_core.1} parent=1 // loop_footer_branch
      %14 = sbr.rel target = $region3
    $region8: #{_ctc_core.1} parent=1 // loop_exit
      _
    %670 = vsyncpa [#allocation3], 1
    %s671 = scalar_lea.sflag [#allocation3], 1
    %672 = vsyncpa %s671, 1
    %673 = vsyncpa [#allocation5], 1

// kernel: _ctc_core.1
$region0: #{_ctc_core.1}
  #allocation0 [shape = 'u32[]', space=smem, size = 0x4, offset = 0x4, fixed_abs, tag = 'smem constant byte address 0x4 - core index']
  #allocation1 [shape = 'u32[144,128]{1,0:T(1,128)}', space=vmem, size = 0x12000, scoped, tag = 'internal scratch']
  %s0 = inlined_call_operand.vmem [shape: bf16[2,16,128], index: 0, kind: input, shape index: {}]
  %s1 = inlined_call_operand.hbm [shape: bf16[128,128], index: 1, kind: input, shape index: {}]
  %s2 = inlined_call_operand.vmem [shape: f32[1,128], index: 2, kind: input, shape index: {}]
  %s3 = inlined_call_operand.hbm [shape: bf16[128,128], index: 3, kind: input, shape index: {}]
  %s4 = inlined_call_operand.vmem [shape: f32[1,128], index: 4, kind: input, shape index: {}]
  %s5 = inlined_call_operand.vmem [shape: bf16[2,16,128], index: 5, kind: output, shape index: {0}]
  %s6 = inlined_call_operand.vmem [shape: f32[2,16,128], index: 6, kind: output, shape index: {1}]
  %7 = xla_tuple %s5, %s6
  %s8 = sld [smem:[#allocation0]]
  $region69: #{_ctc_core.1} parent=0
    _
  %s10 = ssub.s32 1, %s8
  %s11 = scalar_select 0, %s10, %s8
  $region1: #{_ctc_core.1} parent=0
    #allocation2 [shape = 'u8[32768]{0}', space=vmem, size = 0x8000, scoped, tag = 'input window, operand 1, single buffered']
    #allocation3 [shape = 's32[2]{0}', space=sflag, size = 0x8, scoped, tag = 'scoped memory for _ctc_core.1']
    #allocation4 [shape = 'u8[32768]{0}', space=vmem, size = 0x8000, scoped, tag = 'input window, operand 3, single buffered']
    #allocation5 [shape = 's32[1]{0}', space=sflag, size = 0x4, scoped, tag = 'scoped memory for _ctc_core.1']
    %12 = vsyncpa [#allocation3], 0
    %13 = vsyncpa [#allocation5], 0
    loop: start=0, step=1, limit=4
    $region2: #{_ctc_core.1} parent=1 // loop_pre_header
      _
    $region3: #{_ctc_core.1} parent=1 // loop_header
      %s15 = sphi 0, %s19
      %p16 = scmp.ge.s32.totalorder %s15, 4
      %s22 = sphi 0, %s34
      %s23 = sphi 0, %s30
      %s24 = sphi 0, %s22
      %s25 = sphi 0, %s23
      %s26 = sphi 0, %s24
      %s27 = sphi 0, %s25
      %s39 = sphi 0, %s41
      %s42 = sphi 0, %s39
      %s43 = sphi 0, %s42
      %s59 = sphi 0, %s43
      %s63 = sphi 0, %s63
      %s65 = sphi 0, %s63
      %s66 = sphi 0, %s65
      %s80 = sphi 0, %s66
      %s84 = sphi 0, %s84
      %s86 = sphi 0, %s84
      %s87 = sphi 0, %s86
      %s101 = sphi 0, %s87
      %s105 = sphi 0, %s105
      %s107 = sphi 0, %s105
      %s108 = sphi 0, %s107
      %s122 = sphi 0, %s108
      %s126 = sphi 0, %s126
      %s128 = sphi 0, %s126
      %s129 = sphi 0, %s128
      %s143 = sphi 0, %s129
      %s151 = sphi 0, %s153
      %s154 = sphi 0, %s151
      %s155 = sphi 0, %s154
      %s171 = sphi 0, %s155
      %s179 = sphi 0, %s181
      %s182 = sphi 0, %s179
      %s183 = sphi 0, %s182
      %s199 = sphi 0, %s183
    $region4: #{_ctc_core.1} parent=1 // loop_header_branch
      %18 = sbr.rel (%p16) target = $region8
    $region5: #{_ctc_core.1} parent=1 // loop_body
      %s20 = ssub.s32 %s15, 1
      %s21 = ssub.s32 %s15, 2
      %s28 = sadd.s32 1, %s23
      %p29 = scmp.ge.s32.totalorder %s28, 1
      %s30 = scalar_select %p29, 0, %s28
      %s31 = sadd.s32 1, %s22
      %s32 = scalar_select %p29, %s31, %s22
      %p33 = scmp.ge.s32.totalorder %s32, 2
      %s34 = scalar_select %p33, 0, %s32
      %s35 = ssub.s32 %s22, %s34
      %s36 = ssub.s32 %s23, %s30
      %s37 = sor.u32 %s35, %s36
      %p38 = scmp.eq.s32.totalorder %s37, 0
      %s40 = sadd.s32 %s39, 1
      %s41 = scalar_select %p38, %s39, %s40
      %p44 = pneg %p38
      %p45 = scmp.eq.s32.totalorder %s15, 1
      %p46 = por %p44, %p45
      %p47 = scmp.ne.s32.totalorder %s39, %s42
      %p48 = scmp.eq.s32.totalorder %s15, 0
      %p49 = por %p47, %p48
      %p50 = scmp.ne.s32.totalorder %s39, %s42
      %p51 = scmp.eq.s32.totalorder %s20, 1
      %p52 = por %p50, %p51
      %p53 = scmp.ne.s32.totalorder %s42, %s43
      %p54 = scmp.eq.s32.totalorder %s20, 0
      %p55 = por %p53, %p54
      %p56 = scmp.ne.s32.totalorder %s42, %s43
      %p57 = scmp.eq.s32.totalorder %s21, 1
      %p58 = por %p56, %p57
      %p60 = scmp.ne.s32.totalorder %s43, %s59
      %p61 = scmp.eq.s32.totalorder %s21, 0
      %p62 = por %p60, %p61
      %s64 = sadd.s32 %s63, 1
      %p67 = scmp.eq.s32.totalorder %s15, 1
      %p68 = scmp.ne.s32.totalorder %s63, %s65
      %p69 = scmp.eq.s32.totalorder %s15, 0
      %p70 = por %p68, %p69
      %p71 = scmp.ne.s32.totalorder %s63, %s65
      %p72 = scmp.eq.s32.totalorder %s20, 1
      %p73 = por %p71, %p72
      %p74 = scmp.ne.s32.totalorder %s65, %s66
      %p75 = scmp.eq.s32.totalorder %s20, 0
      %p76 = por %p74, %p75
      %p77 = scmp.ne.s32.totalorder %s65, %s66
      %p78 = scmp.eq.s32.totalorder %s21, 1
      %p79 = por %p77, %p78
      %p81 = scmp.ne.s32.totalorder %s66, %s80
      %p82 = scmp.eq.s32.totalorder %s21, 0
      %p83 = por %p81, %p82
      %s85 = sadd.s32 %s84, 1
      %p88 = scmp.eq.s32.totalorder %s15, 1
      %p89 = scmp.ne.s32.totalorder %s84, %s86
      %p90 = scmp.eq.s32.totalorder %s15, 0
      %p91 = por %p89, %p90
      %p92 = scmp.ne.s32.totalorder %s84, %s86
      %p93 = scmp.eq.s32.totalorder %s20, 1
      %p94 = por %p92, %p93
      %p95 = scmp.ne.s32.totalorder %s86, %s87
      %p96 = scmp.eq.s32.totalorder %s20, 0
      %p97 = por %p95, %p96
      %p98 = scmp.ne.s32.totalorder %s86, %s87
      %p99 = scmp.eq.s32.totalorder %s21, 1
      %p100 = por %p98, %p99
      %p102 = scmp.ne.s32.totalorder %s87, %s101
      %p103 = scmp.eq.s32.totalorder %s21, 0
      %p104 = por %p102, %p103
      %s106 = sadd.s32 %s105, 1
      %p109 = scmp.eq.s32.totalorder %s15, 1
      %p110 = scmp.ne.s32.totalorder %s105, %s107
      %p111 = scmp.eq.s32.totalorder %s15, 0
      %p112 = por %p110, %p111
      %p113 = scmp.ne.s32.totalorder %s105, %s107
      %p114 = scmp.eq.s32.totalorder %s20, 1
      %p115 = por %p113, %p114
      %p116 = scmp.ne.s32.totalorder %s107, %s108
      %p117 = scmp.eq.s32.totalorder %s20, 0
      %p118 = por %p116, %p117
      %p119 = scmp.ne.s32.totalorder %s107, %s108
      %p120 = scmp.eq.s32.totalorder %s21, 1
      %p121 = por %p119, %p120
      %p123 = scmp.ne.s32.totalorder %s108, %s122
      %p124 = scmp.eq.s32.totalorder %s21, 0
      %p125 = por %p123, %p124
      %s127 = sadd.s32 %s126, 1
      %p130 = scmp.eq.s32.totalorder %s15, 1
      %p131 = scmp.ne.s32.totalorder %s126, %s128
      %p132 = scmp.eq.s32.totalorder %s15, 0
      %p133 = por %p131, %p132
      %p134 = scmp.ne.s32.totalorder %s126, %s128
      %p135 = scmp.eq.s32.totalorder %s20, 1
      %p136 = por %p134, %p135
      %p137 = scmp.ne.s32.totalorder %s128, %s129
      %p138 = scmp.eq.s32.totalorder %s20, 0
      %p139 = por %p137, %p138
      %p140 = scmp.ne.s32.totalorder %s128, %s129
      %p141 = scmp.eq.s32.totalorder %s21, 1
      %p142 = por %p140, %p141
      %p144 = scmp.ne.s32.totalorder %s129, %s143
      %p145 = scmp.eq.s32.totalorder %s21, 0
      %p146 = por %p144, %p145
      %s147 = ssub.s32 %s22, %s34
      %s148 = ssub.s32 %s23, %s30
      %s149 = sor.u32 %s147, %s148
      %p150 = scmp.eq.s32.totalorder %s149, 0
      %s152 = sadd.s32 %s151, 1
      %s153 = scalar_select %p150, %s151, %s152
      %p156 = pneg %p150
      %p157 = scmp.eq.s32.totalorder %s15, 1
      %p158 = por %p156, %p157
      %p159 = scmp.ne.s32.totalorder %s151, %s154
      %p160 = scmp.eq.s32.totalorder %s15, 0
      %p161 = por %p159, %p160
      %p162 = scmp.ne.s32.totalorder %s151, %s154
      %p163 = scmp.eq.s32.totalorder %s20, 1
      %p164 = por %p162, %p163
      %p165 = scmp.ne.s32.totalorder %s154, %s155
      %p166 = scmp.eq.s32.totalorder %s20, 0
      %p167 = por %p165, %p166
      %p168 = scmp.ne.s32.totalorder %s154, %s155
      %p169 = scmp.eq.s32.totalorder %s21, 1
      %p170 = por %p168, %p169
      %p172 = scmp.ne.s32.totalorder %s155, %s171
      %p173 = scmp.eq.s32.totalorder %s21, 0
      %p174 = por %p172, %p173
      %s175 = ssub.s32 %s22, %s34
      %s176 = ssub.s32 %s23, %s30
      %s177 = sor.u32 %s175, %s176
      %p178 = scmp.eq.s32.totalorder %s177, 0
      %s180 = sadd.s32 %s179, 1
      %s181 = scalar_select %p178, %s179, %s180
      %p184 = pneg %p178
      %p185 = scmp.eq.s32.totalorder %s15, 1
      %p186 = por %p184, %p185
      %p187 = scmp.ne.s32.totalorder %s179, %s182
      %p188 = scmp.eq.s32.totalorder %s15, 0
      %p189 = por %p187, %p188
      %p190 = scmp.ne.s32.totalorder %s179, %s182
      %p191 = scmp.eq.s32.totalorder %s20, 1
      %p192 = por %p190, %p191
      %p193 = scmp.ne.s32.totalorder %s182, %s183
      %p194 = scmp.eq.s32.totalorder %s20, 0
      %p195 = por %p193, %p194
      %p196 = scmp.ne.s32.totalorder %s182, %s183
      %p197 = scmp.eq.s32.totalorder %s21, 1
      %p198 = por %p196, %p197
      %p200 = scmp.ne.s32.totalorder %s183, %s199
      %p201 = scmp.eq.s32.totalorder %s21, 0
      %p202 = por %p200, %p201
      %p203 = scmp.le.s32.totalorder 1, %s15
      %p204 = scmp.lt.s32.totalorder %s15, 3
      %p205 = pnand %p203, %p204
      %p206 = pneg %p205
      // Predicated region
      $region9: #{_ctc_core.1} parent=5 // pred_check
        _
      $region10: #{_ctc_core.1} parent=5 // pred_check_branch
        %208 = sbr.rel (%p205) target = $region12
      $region11: #{_ctc_core.1} parent=5 // pred_region
        %s209 = ssub.s32 %s15, 1
        // Predicated region
        $region13: #{_ctc_core.1} parent=11 // pred_check
          %p210 = pneg %p76
        $region14: #{_ctc_core.1} parent=11 // pred_check_branch
          %212 = sbr.rel (%p210) target = $region16
        $region15: #{_ctc_core.1} parent=11 // pred_region
          %s214 = ssub.s32 1024, 1024
          %215 = vsyncadd [#allocation3], %s214
          %s216 = sshll.u32 [#allocation2], 4
          %s217 = int_to_ptr.vmem [resolvable:$true] %s216
          %222 = dma.hbm_to_vmem [thread:$0]  %s1, 1024, %s217, [#allocation3], 64, 64, 4
        $region16: #{_ctc_core.1} parent=11 // pred_fallthru
          _
        // Predicated region
        $region17: #{_ctc_core.1} parent=11 // pred_check
          %p223 = pneg %p97
        $region18: #{_ctc_core.1} parent=11 // pred_check_branch
          %225 = sbr.rel (%p223) target = $region20
        $region19: #{_ctc_core.1} parent=11 // pred_region
          _
        $region20: #{_ctc_core.1} parent=11 // pred_fallthru
          _
        // Predicated region
        $region21: #{_ctc_core.1} parent=11 // pred_check
          %p226 = pneg %p118
        $region22: #{_ctc_core.1} parent=11 // pred_check_branch
          %228 = sbr.rel (%p226) target = $region24
        $region23: #{_ctc_core.1} parent=11 // pred_region
          %s230 = ssub.s32 1024, 1024
          %231 = vsyncadd [#allocation5], %s230
          %s232 = sshll.u32 [#allocation4], 4
          %s233 = int_to_ptr.vmem [resolvable:$true] %s232
          %238 = dma.hbm_to_vmem [thread:$0]  %s3, 1024, %s233, [#allocation5], 64, 64, 4
        $region24: #{_ctc_core.1} parent=11 // pred_fallthru
          _
        // Predicated region
        $region25: #{_ctc_core.1} parent=11 // pred_check
          %p239 = pneg %p139
        $region26: #{_ctc_core.1} parent=11 // pred_check_branch
          %241 = sbr.rel (%p239) target = $region28
        $region27: #{_ctc_core.1} parent=11 // pred_region
          _
        $region28: #{_ctc_core.1} parent=11 // pred_fallthru
          _
      $region12: #{_ctc_core.1} parent=5 // pred_fallthru
        _
      %p242 = scmp.lt.s32.totalorder %s15, 2
      // Predicated region
      $region29: #{_ctc_core.1} parent=5 // pred_check
        %p243 = pneg %p242
      $region30: #{_ctc_core.1} parent=5 // pred_check_branch
        %245 = sbr.rel (%p243) target = $region32
      $region31: #{_ctc_core.1} parent=5 // pred_region
        // Predicated region
        $region33: #{_ctc_core.1} parent=31 // pred_check
          %p246 = pneg %p49
        $region34: #{_ctc_core.1} parent=31 // pred_check_branch
          %248 = sbr.rel (%p246) target = $region36
        $region35: #{_ctc_core.1} parent=31 // pred_region
          %s249 = smul.u32 2, %s23
          %p250 = scmp.lt.s32.totalorder %s22, 1
          %s251 = scalar_select %p250, %s22, 1
          %p252 = scmp.lt.s32.totalorder %s249, 1
          %s253 = scalar_select %p252, %s249, 1
          %s254 = smul.addr %s251, 2
          %s255 = sadd.s32 %s253, %s254
          %s256 = smul.addr %s255, 4
          %s257 = scalar_lea.vmem %s0, %s256
          %s258 = smul.u32 2, %s23
        $region36: #{_ctc_core.1} parent=31 // pred_fallthru
          _
      $region32: #{_ctc_core.1} parent=5 // pred_fallthru
        _
      %p259 = scmp.le.s32.totalorder 1, %s15
      %p260 = scmp.lt.s32.totalorder %s15, 3
      %p261 = pnand %p259, %p260
      %p262 = pneg %p261
      // Predicated region
      $region37: #{_ctc_core.1} parent=5 // pred_check
        _
      $region38: #{_ctc_core.1} parent=5 // pred_check_branch
        %264 = sbr.rel (%p261) target = $region40
      $region39: #{_ctc_core.1} parent=5 // pred_region
        %s265 = ssub.s32 %s15, 1
        // Predicated region
        $region41: #{_ctc_core.1} parent=39 // pred_check
          %p266 = pneg %p76
        $region42: #{_ctc_core.1} parent=39 // pred_check_branch
          %268 = sbr.rel (%p266) target = $region44
        $region43: #{_ctc_core.1} parent=39 // pred_region
          %269 = dma.done [#allocation3], 1024
        $region44: #{_ctc_core.1} parent=39 // pred_fallthru
          _
        // Predicated region
        $region45: #{_ctc_core.1} parent=39 // pred_check
          %p270 = pneg %p118
        $region46: #{_ctc_core.1} parent=39 // pred_check_branch
          %272 = sbr.rel (%p270) target = $region48
        $region47: #{_ctc_core.1} parent=39 // pred_region
          %273 = dma.done [#allocation5], 1024
        $region48: #{_ctc_core.1} parent=39 // pred_fallthru
          _
        %s274 = smul.u32 2, %s25
        %p275 = scmp.lt.s32.totalorder %s24, 1
        %s276 = scalar_select %p275, %s24, 1
        %p277 = scmp.lt.s32.totalorder %s274, 1
        %s278 = scalar_select %p277, %s274, 1
        %s279 = smul.addr %s276, 2
        %s280 = sadd.s32 %s278, %s279
        %s281 = smul.addr %s280, 4
        %s282 = scalar_lea.vmem %s0, %s281
        %p283 = pneg %p55
        %p284 = pneg %p52
        %p285 = pneg %p76
        %p286 = pneg %p73
        %p287 = pneg %p97
        %p288 = pneg %p94
        %p289 = pneg %p118
        %p290 = pneg %p115
        %p291 = pneg %p139
        %p292 = pneg %p136
        %p293 = pneg %p167
        %p294 = pneg %p164
        %s295 = smul.u32 2, %s25
        %p296 = scmp.lt.s32.totalorder %s24, 1
        %s297 = scalar_select %p296, %s24, 1
        %p298 = scmp.lt.s32.totalorder %s295, 1
        %s299 = scalar_select %p298, %s295, 1
        %s300 = smul.addr %s297, 2
        %s301 = sadd.s32 %s299, %s300
        %s302 = smul.addr %s301, 4
        %s303 = scalar_lea.vmem %s5, %s302
        %p304 = pneg %p195
        %p305 = pneg %p192
        %s306 = smul.u32 2, %s25
        %p307 = scmp.lt.s32.totalorder %s24, 1
        %s308 = scalar_select %p307, %s24, 1
        %p309 = scmp.lt.s32.totalorder %s306, 1
        %s310 = scalar_select %p309, %s306, 1
        %s311 = smul.addr %s308, 2
        %s312 = sadd.s32 %s310, %s311
        %s313 = smul.addr %s312, 8
        %s314 = scalar_lea.vmem %s6, %s313
        %s315 = smul.u32 2, %s25
        %p316 = scmp.lt.s32.totalorder %s24, 1
        %s317 = scalar_select %p316, %s24, 1
        %p318 = scmp.lt.s32.totalorder %s315, 1
        %s319 = scalar_select %p318, %s315, 1
        %s320 = smul.addr %s317, 2
        %s321 = sadd.s32 %s319, %s320
        %s322 = smul.addr %s321, 4
        %s323 = scalar_lea.vmem %s0, %s322
        %s324 = smul.u32 2, %s25
        %s325 = smul.u32 2, %s25
        %p326 = scmp.lt.s32.totalorder %s24, 1
        %s327 = scalar_select %p326, %s24, 1
        %p328 = scmp.lt.s32.totalorder %s325, 1
        %s329 = scalar_select %p328, %s325, 1
        %s330 = smul.addr %s327, 2
        %s331 = sadd.s32 %s329, %s330
        %s332 = smul.addr %s331, 4
        %s333 = scalar_lea.vmem %s5, %s332
        %s334 = smul.u32 2, %s25
        %s335 = smul.u32 2, %s25
        %p336 = scmp.lt.s32.totalorder %s24, 1
        %s337 = scalar_select %p336, %s24, 1
        %p338 = scmp.lt.s32.totalorder %s335, 1
        %s339 = scalar_select %p338, %s335, 1
        %s340 = smul.addr %s337, 2
        %s341 = sadd.s32 %s339, %s340
        %s342 = smul.addr %s341, 8
        %s343 = scalar_lea.vmem %s6, %s342
        %s344 = smul.u32 2, %s25
        %v346 = vld [vmem:[%s323] sm:$0xf]
        %v347 = vld [vmem:[%s323 + $0x4] sm:$0xf]
        %v348 = vld [vmem:[#allocation2] sm:$0xf]
        %v349 = vld [vmem:[#allocation2 + $0x4] sm:$0xf]
        %v350 = vld [vmem:[#allocation2 + $0x8] sm:$0xf]
        %v351 = vld [vmem:[#allocation2 + $0xc] sm:$0xf]
        %v352 = vld [vmem:[#allocation2 + $0x10] sm:$0xf]
        %v353 = vld [vmem:[#allocation2 + $0x14] sm:$0xf]
        %v354 = vld [vmem:[#allocation2 + $0x18] sm:$0xf]
        %v355 = vld [vmem:[#allocation2 + $0x1c] sm:$0xf]
        %v356 = vld [vmem:[#allocation2 + $0x20] sm:$0xf]
        %v357 = vld [vmem:[#allocation2 + $0x24] sm:$0xf]
        %v358 = vld [vmem:[#allocation2 + $0x28] sm:$0xf]
        %v359 = vld [vmem:[#allocation2 + $0x2c] sm:$0xf]
        %v360 = vld [vmem:[#allocation2 + $0x30] sm:$0xf]
        %v361 = vld [vmem:[#allocation2 + $0x34] sm:$0xf]
        %v362 = vld [vmem:[#allocation2 + $0x38] sm:$0xf]
        %v363 = vld [vmem:[#allocation2 + $0x3c] sm:$0xf]
        %v364 = vld [vmem:[%s2] sm:$0x1]
        %v366 = vlaneseq
        %v367 = vshrl.u32 %v366, 7
        %v368 = vsub.s32 0, %v367
        %v369 = vrot.slane %v364, %v368
        %v373 = vunpack.c.l.b16 %v346
        %v374 = vunpack.c.l.b16 %v347
        %v375 = vpack.c.b16 %v374, %v373
        %v393 = vunpack.c.l.b16 %v348
        %v394 = vunpack.c.l.b16 %v349
        %v395 = vunpack.c.l.b16 %v350
        %v396 = vunpack.c.l.b16 %v351
        %v397 = vunpack.c.l.b16 %v352
        %v398 = vunpack.c.l.b16 %v353
        %v399 = vunpack.c.l.b16 %v354
        %v400 = vunpack.c.l.b16 %v355
        %v401 = vunpack.c.l.b16 %v356
        %v402 = vunpack.c.l.b16 %v357
        %v403 = vunpack.c.l.b16 %v358
        %v404 = vunpack.c.l.b16 %v359
        %v405 = vunpack.c.l.b16 %v360
        %v406 = vunpack.c.l.b16 %v361
        %v407 = vunpack.c.l.b16 %v362
        %v408 = vunpack.c.l.b16 %v363
        %v409 = vpack.c.b16 %v394, %v393
        %v410 = vpack.c.b16 %v396, %v395
        %v411 = vpack.c.b16 %v398, %v397
        %v412 = vpack.c.b16 %v400, %v399
        %v413 = vpack.c.b16 %v402, %v401
        %v414 = vpack.c.b16 %v404, %v403
        %v415 = vpack.c.b16 %v406, %v405
        %v416 = vpack.c.b16 %v408, %v407
        %425 = vmatprep.subr.bf16.mxu0 0
        %426 = vmatpush1.bf16.msra.mxu0 %v409
        %427 = vmatprep.subr.bf16.mxu0 0
        %428 = vmatpush1.bf16.msra.mxu0 %v410
        %429 = vmatprep.subr.bf16.mxu0 0
        %430 = vmatpush1.bf16.msra.mxu0 %v411
        %431 = vmatprep.subr.bf16.mxu0 0
        %432 = vmatpush1.bf16.msra.mxu0 %v412
        %433 = vmatprep.subr.bf16.mxu0 0
        %434 = vmatpush1.bf16.msra.mxu0 %v413
        %435 = vmatprep.subr.bf16.mxu0 0
        %436 = vmatpush1.bf16.msra.mxu0 %v414
        %437 = vmatprep.subr.bf16.mxu0 0
        %438 = vmatpush1.bf16.msra.mxu0 %v415
        %439 = vmatprep.subr.bf16.mxu0 0
        %440 = vmatpush1.bf16.msra.mxu0 %v416
        %441 = vmatprep.subr.bf16.mxu0 0
        %442 = vmatpush1.bf16.msra.mxu0 0
        %443 = vmatprep.subr.bf16.mxu0 0
        %444 = vmatpush1.bf16.msra.mxu0 0
        %445 = vmatprep.subr.bf16.mxu0 0
        %446 = vmatpush1.bf16.msra.mxu0 0
        %447 = vmatprep.subr.bf16.mxu0 0
        %448 = vmatpush1.bf16.msra.mxu0 0
        %449 = vmatprep.subr.bf16.mxu0 0
        %450 = vmatpush1.bf16.msra.mxu0 0
        %451 = vmatprep.subr.bf16.mxu0 0
        %452 = vmatpush1.bf16.msra.mxu0 0
        %453 = vmatprep.subr.bf16.mxu0 0
        %454 = vmatpush1.bf16.msra.mxu0 0
        %455 = vmatprep.subr.bf16.mxu0 0
        %456 = vmatpush1.bf16.msra.mxu0 0
        %457 = vmatprep.mubr.bf16.mxu0 0
        %458 = vmatmul.mubr.bf16.gmra.mrb[0].mxu0 %v375
        %v459 = vpop.f32.mrb[0].mxu0
        %v460 = vadd.f32 %v369, %v459
        %v461 = vpop.f32.mrb[0].mxu0
        %v462 = vpop.f32.mrb[0].mxu0
        %v463 = vadd.f32 %v369, %v462
        %v464 = vpop.f32.mrb[0].mxu0
        %465 = vdwg.mxu0
        %v466 = vmax.f32 %v460, 0.0
        %v467 = vmax.f32 %v463, 0.0
        %v468 = vpack.c.bf16 %v467, %v466
        %v469 = vld [vmem:[#allocation4] sm:$0xf]
        %v470 = vld [vmem:[#allocation4 + $0x4] sm:$0xf]
        %v471 = vld [vmem:[#allocation4 + $0x8] sm:$0xf]
        %v472 = vld [vmem:[#allocation4 + $0xc] sm:$0xf]
        %v473 = vld [vmem:[#allocation4 + $0x10] sm:$0xf]
        %v474 = vld [vmem:[#allocation4 + $0x14] sm:$0xf]
        %v475 = vld [vmem:[#allocation4 + $0x18] sm:$0xf]
        %v476 = vld [vmem:[#allocation4 + $0x1c] sm:$0xf]
        %v477 = vld [vmem:[#allocation4 + $0x20] sm:$0xf]
        %v478 = vld [vmem:[#allocation4 + $0x24] sm:$0xf]
        %v479 = vld [vmem:[#allocation4 + $0x28] sm:$0xf]
        %v480 = vld [vmem:[#allocation4 + $0x2c] sm:$0xf]
        %v481 = vld [vmem:[#allocation4 + $0x30] sm:$0xf]
        %v482 = vld [vmem:[#allocation4 + $0x34] sm:$0xf]
        %v483 = vld [vmem:[#allocation4 + $0x38] sm:$0xf]
        %v484 = vld [vmem:[#allocation4 + $0x3c] sm:$0xf]
        %v485 = vld [vmem:[%s4] sm:$0x1]
        %v487 = vlaneseq
        %v488 = vshrl.u32 %v487, 7
        %v489 = vsub.s32 0, %v488
        %v490 = vrot.slane %v485, %v489
        %v508 = vunpack.c.l.b16 %v469
        %v509 = vunpack.c.l.b16 %v470
        %v510 = vunpack.c.l.b16 %v471
        %v511 = vunpack.c.l.b16 %v472
        %v512 = vunpack.c.l.b16 %v473
        %v513 = vunpack.c.l.b16 %v474
        %v514 = vunpack.c.l.b16 %v475
        %v515 = vunpack.c.l.b16 %v476
        %v516 = vunpack.c.l.b16 %v477
        %v517 = vunpack.c.l.b16 %v478
        %v518 = vunpack.c.l.b16 %v479
        %v519 = vunpack.c.l.b16 %v480
        %v520 = vunpack.c.l.b16 %v481
        %v521 = vunpack.c.l.b16 %v482
        %v522 = vunpack.c.l.b16 %v483
        %v523 = vunpack.c.l.b16 %v484
        %v524 = vpack.c.b16 %v509, %v508
        %v525 = vpack.c.b16 %v511, %v510
        %v526 = vpack.c.b16 %v513, %v512
        %v527 = vpack.c.b16 %v515, %v514
        %v528 = vpack.c.b16 %v517, %v516
        %v529 = vpack.c.b16 %v519, %v518
        %v530 = vpack.c.b16 %v521, %v520
        %v531 = vpack.c.b16 %v523, %v522
        %540 = vmatprep.subr.bf16.mxu0 0
        %541 = vmatpush1.bf16.msra.mxu0 %v524
        %542 = vmatprep.subr.bf16.mxu0 0
        %543 = vmatpush1.bf16.msra.mxu0 %v525
        %544 = vmatprep.subr.bf16.mxu0 0
        %545 = vmatpush1.bf16.msra.mxu0 %v526
        %546 = vmatprep.subr.bf16.mxu0 0
        %547 = vmatpush1.bf16.msra.mxu0 %v527
        %548 = vmatprep.subr.bf16.mxu0 0
        %549 = vmatpush1.bf16.msra.mxu0 %v528
        %550 = vmatprep.subr.bf16.mxu0 0
        %551 = vmatpush1.bf16.msra.mxu0 %v529
        %552 = vmatprep.subr.bf16.mxu0 0
        %553 = vmatpush1.bf16.msra.mxu0 %v530
        %554 = vmatprep.subr.bf16.mxu0 0
        %555 = vmatpush1.bf16.msra.mxu0 %v531
        %556 = vmatprep.subr.bf16.mxu0 0
        %557 = vmatpush1.bf16.msra.mxu0 0
        %558 = vmatprep.subr.bf16.mxu0 0
        %559 = vmatpush1.bf16.msra.mxu0 0
        %560 = vmatprep.subr.bf16.mxu0 0
        %561 = vmatpush1.bf16.msra.mxu0 0
        %562 = vmatprep.subr.bf16.mxu0 0
        %563 = vmatpush1.bf16.msra.mxu0 0
        %564 = vmatprep.subr.bf16.mxu0 0
        %565 = vmatpush1.bf16.msra.mxu0 0
        %566 = vmatprep.subr.bf16.mxu0 0
        %567 = vmatpush1.bf16.msra.mxu0 0
        %568 = vmatprep.subr.bf16.mxu0 0
        %569 = vmatpush1.bf16.msra.mxu0 0
        %570 = vmatprep.subr.bf16.mxu0 0
        %571 = vmatpush1.bf16.msra.mxu0 0
        %572 = vmatprep.mubr.bf16.mxu0 0
        %573 = vmatmul.mubr.bf16.gmra.mrb[0].mxu0 %v468
        %v574 = vpop.f32.mrb[0].mxu0
        %v575 = vadd.f32 %v490, %v574
        %v576 = vpop.f32.mrb[0].mxu0
        %v577 = vpop.f32.mrb[0].mxu0
        %v578 = vadd.f32 %v490, %v577
        %v579 = vpop.f32.mrb[0].mxu0
        %580 = vdwg.mxu0
        %581 = vmax.xlane.f32.xlu0 %v575
        %v582 = vpop.xlane.xlu0 %581
        %583 = vmax.xlane.f32.xlu0 %v578
        %v584 = vpop.xlane.xlu0 %583
        %v585 = vsub.f32 %v575, %v582
        %v586 = vsub.f32 %v578, %v584
        %v587 = vmul.f32 %v585, 1.442695
        %v588 = vpow.pop %v587
        %v589 = vmul.f32 %v586, 1.442695
        %v590 = vpow.pop %v589
        %591 = vadd.xlane.f32.xlu0 %v588
        %v592 = vpop.xlane.xlu0 %591
        %593 = vadd.xlane.f32.xlu0 %v590
        %v594 = vpop.xlane.xlu0 %593
        %v595 = vlog2.pop %v592
        %v596 = vmul.f32 %v595, 0.6931472
        %v597 = vlog2.pop %v594
        %v598 = vmul.f32 %v597, 0.6931472
        %v599 = vsub.f32 %v585, %v596
        %v600 = vsub.f32 %v586, %v598
        %v601 = vpack.c.bf16 %v600, %v599
        %v603 = vunpack.c.l.b16 %v601
        %v604 = vunpack.c.h.b16 %v601
        %v605 = vpack.c.b16 %v603, %v603
        %v606 = vpack.c.b16 %v604, %v604
        %609 = vst [vmem:[%s333] sm:$0xf] %v605
        %610 = vst [vmem:[%s333 + $0x4] sm:$0xf] %v606
        %v611 = vadd.f32 %v582, %v596
        %v612 = vadd.f32 %v584, %v598
        %613 = vst [vmem:[%s343] sm:$0xff] %v611
        %614 = vst [vmem:[%s343 + $0x8] sm:$0xff] %v612
        %s615 = smul.u32 2, %s25
        %p616 = scmp.lt.s32.totalorder %s24, 1
        %s617 = scalar_select %p616, %s24, 1
        %p618 = scmp.lt.s32.totalorder %s615, 1
        %s619 = scalar_select %p618, %s615, 1
        %s620 = smul.addr %s617, 2
        %s621 = sadd.s32 %s619, %s620
        %s622 = smul.addr %s621, 4
        %s623 = scalar_lea.vmem %s5, %s622
        %s624 = smul.u32 2, %s25
        %p625 = scmp.lt.s32.totalorder %s24, 1
        %s626 = scalar_select %p625, %s24, 1
        %p627 = scmp.lt.s32.totalorder %s624, 1
        %s628 = scalar_select %p627, %s624, 1
        %s629 = smul.addr %s626, 2
        %s630 = sadd.s32 %s628, %s629
        %s631 = smul.addr %s630, 8
        %s632 = scalar_lea.vmem %s6, %s631
        // Predicated region
        $region49: #{_ctc_core.1} parent=39 // pred_check
          %p633 = pneg %p164
        $region50: #{_ctc_core.1} parent=39 // pred_check_branch
          %635 = sbr.rel (%p633) target = $region52
        $region51: #{_ctc_core.1} parent=39 // pred_region
          %s636 = smul.u32 2, %s25
        $region52: #{_ctc_core.1} parent=39 // pred_fallthru
          _
        // Predicated region
        $region53: #{_ctc_core.1} parent=39 // pred_check
          %p637 = pneg %p192
        $region54: #{_ctc_core.1} parent=39 // pred_check_branch
          %639 = sbr.rel (%p637) target = $region56
        $region55: #{_ctc_core.1} parent=39 // pred_region
          %s640 = smul.u32 2, %s25
        $region56: #{_ctc_core.1} parent=39 // pred_fallthru
          _
      $region40: #{_ctc_core.1} parent=5 // pred_fallthru
        _
      %p641 = scmp.le.s32.totalorder 2, %s15
      // Predicated region
      $region57: #{_ctc_core.1} parent=5 // pred_check
        %p642 = pneg %p641
      $region58: #{_ctc_core.1} parent=5 // pred_check_branch
        %644 = sbr.rel (%p642) target = $region60
      $region59: #{_ctc_core.1} parent=5 // pred_region
        %s645 = ssub.s32 %s15, 2
        // Predicated region
        $region61: #{_ctc_core.1} parent=59 // pred_check
          %p646 = pneg %p170
        $region62: #{_ctc_core.1} parent=59 // pred_check_branch
          %648 = sbr.rel (%p646) target = $region64
        $region63: #{_ctc_core.1} parent=59 // pred_region
          %s649 = smul.u32 2, %s27
          %p650 = scmp.lt.s32.totalorder %s26, 1
          %s651 = scalar_select %p650, %s26, 1
          %p652 = scmp.lt.s32.totalorder %s649, 1
          %s653 = scalar_select %p652, %s649, 1
          %s654 = smul.addr %s651, 2
          %s655 = sadd.s32 %s653, %s654
          %s656 = smul.addr %s655, 4
          %s657 = scalar_lea.vmem %s5, %s656
        $region64: #{_ctc_core.1} parent=59 // pred_fallthru
          _
        // Predicated region
        $region65: #{_ctc_core.1} parent=59 // pred_check
          %p658 = pneg %p198
        $region66: #{_ctc_core.1} parent=59 // pred_check_branch
          %660 = sbr.rel (%p658) target = $region68
        $region67: #{_ctc_core.1} parent=59 // pred_region
          %s661 = smul.u32 2, %s27
          %p662 = scmp.lt.s32.totalorder %s26, 1
          %s663 = scalar_select %p662, %s26, 1
          %p664 = scmp.lt.s32.totalorder %s661, 1
          %s665 = scalar_select %p664, %s661, 1
          %s666 = smul.addr %s663, 2
          %s667 = sadd.s32 %s665, %s666
          %s668 = smul.addr %s667, 8
          %s669 = scalar_lea.vmem %s6, %s668
        $region68: #{_ctc_core.1} parent=59 // pred_fallthru
          _
      $region60: #{_ctc_core.1} parent=5 // pred_fallthru
        _
    $region6: #{_ctc_core.1} parent=1 // loop_footer
      %s19 = sadd.s32 1, %s15
    $region7: #{_ctc_core.1} parent=1 // loop_footer_branch
      %14 = sbr.rel target = $region3
    $region8: #{_ctc_core.1} parent=1 // loop_exit
      _
    %670 = vsyncpa [#allocation3], 1
    %s671 = scalar_lea.sflag [#allocation3], 1
    %672 = vsyncpa %s671, 1
    %673 = vsyncpa [#allocation5], 1

</llo_original>
